<compile_context>
chip_gen: v5e
topology: v5e:2x2
jax: 0.10.0
libtpu: 0.0.40
codegen_flags: <defaults>
</compile_context>

<pallas_src>
import functools

import jax
import jax.numpy as jnp
import numpy as np
from jax.experimental import pallas as pl
from jax.experimental.pallas import tpu as pltpu

LANE = 128                      # pixel (lane) axis padded to a multiple of this
ACT_DTYPE = jnp.bfloat16        # HBM streaming dtype for inter-layer activations
_MAX_LANES_PER_CALL = 8192      # batch-chunking bound (keeps worst-kernel VMEM small)

_CPARAMS = pltpu.CompilerParams(
    dimension_semantics=("arbitrary",),
    vmem_limit_bytes=32 * 1024 * 1024,
)


def _round_up(x, m):
    return (x + m - 1) // m * m


def _w_mat(w_oihw):
    """PyTorch Conv2d weight (Cout, Cin, 3, 3) -> (Cout, 9*Cin) GEMM matrix.

    K ordered (dy, dx, ci) to match the in-kernel tap concatenation order.
    """
    cout, cin = w_oihw.shape[0], w_oihw.shape[1]
    return jnp.transpose(w_oihw, (0, 2, 3, 1)).reshape(cout, 9 * cin).astype(jnp.float32)


def _edge_masks(hs, ws, mp):
    """(4, Mp) f32 {0,1} validity rows for lane-shifted conv taps.

    Rows: [qy=-1 ok, qy=+1 ok, qx=-1 ok, qx=+1 ok], evaluated at each flat
    output pixel m = n*hs*ws + y*ws + x (pad lanes m >= N*hs*ws are don't-care).
    """
    m = np.arange(mp)
    xs = m % ws
    ys = (m // ws) % hs
    rows = np.stack([ys >= 1, ys <= hs - 2, xs >= 1, xs <= ws - 2])
    return jnp.asarray(rows.astype(np.float32))


def _masked_roll(x, masks, qy, qx, ws):
    """tap[m] = x[m + qy*ws + qx] where the shifted coord is in-bounds, else 0."""
    mp = x.shape[-1]
    s = qy * ws + qx
    t = x if s == 0 else pltpu.roll(x, shift=(-s) % mp, axis=1)
    if qy == -1:
        t = t * masks[0:1, :]
    elif qy == 1:
        t = t * masks[1:2, :]
    if qx == -1:
        t = t * masks[2:3, :]
    elif qx == 1:
        t = t * masks[3:4, :]
    return t


# ---------------------------------------------------------------------------
# Kernels (all operate on flattened (C, Mp) slabs, pixel axis on lanes)
# ---------------------------------------------------------------------------
def _conv_kernel(w_ref, b_ref, m_ref, x_ref, o_ref, *, ws, relu):
    """3x3 'same' conv (+ReLU): in-kernel im2col via 9 masked lane rolls."""
    x = x_ref[...].astype(jnp.float32)
    masks = m_ref[...]
    taps = [_masked_roll(x, masks, dy - 1, dx - 1, ws)
            for dy in range(3) for dx in range(3)]
    patches = jnp.concatenate(taps, axis=0)                    # (9*Cin, Mp), VMEM only
    acc = jnp.dot(w_ref[...], patches, preferred_element_type=jnp.float32)
    acc = acc + b_ref[...]
    if relu:
        acc = jnp.maximum(acc, 0.0)
    o_ref[...] = acc.astype(o_ref.dtype)


def _conv_pool_kernel(w_ref, b_ref, m_ref, c00_ref, c01_ref, c10_ref, c11_ref,
                      o_ref, *, ws):
    """Fused Conv2d(3x3, pad 1) + ReLU + MaxPool2d(2).

    Inputs: the 4 parity-decimated corner slabs of the full-res activation,
    already on the pooled pixel grid (the only resolution-change glue left).
    """
    corners = {
        (0, 0): c00_ref[...].astype(jnp.float32),
        (0, 1): c01_ref[...].astype(jnp.float32),
        (1, 0): c10_ref[...].astype(jnp.float32),
        (1, 1): c11_ref[...].astype(jnp.float32),
    }
    masks = m_ref[...]
    rolled = {}
    acc = None
    for py in range(2):                 # pool corner = conv-output parity
        for px in range(2):
            taps = []
            for dy in range(3):
                for dx in range(3):
                    qy, ry = divmod(py + dy - 1, 2)     # source corner + pooled-grid shift
                    qx, rx = divmod(px + dx - 1, 2)
                    key = (ry, rx, qy, qx)
                    if key not in rolled:
                        rolled[key] = _masked_roll(corners[(ry, rx)], masks, qy, qx, ws)
                    taps.append(rolled[key])
            patches = jnp.concatenate(taps, axis=0)             # (9*Cin, Mp)
            d = jnp.dot(w_ref[...], patches, preferred_element_type=jnp.float32)
            acc = d if acc is None else jnp.maximum(acc, d)     # max-pool over corners
    acc = acc + b_ref[...]              # max/+bias/ReLU commute, reordering is exact
    o_ref[...] = jnp.maximum(acc, 0.0).astype(o_ref.dtype)


def _up_conv_kernel(w_ref, b_ref, m_ref, x_ref, o_ref, *, ws, relu):
    """Fused Upsample(2, nearest) + Conv2d(3x3, pad 1) (+ReLU).

    Works entirely on the LOW-res slab; writes 4 output-parity slabs.  The 4x
    upsampled tensor is never materialized (in VMEM or HBM).
    """
    x = x_ref[...].astype(jnp.float32)
    masks = m_ref[...]
    rolled = {}
    for py in range(2):                 # output parity
        for px in range(2):
            taps = []
            for dy in range(3):
                for dx in range(3):
                    qy = (py + dy - 1) // 2     # nearest-neighbour source shift
                    qx = (px + dx - 1) // 2
                    key = (qy, qx)
                    if key not in rolled:
                        rolled[key] = _masked_roll(x, masks, qy, qx, ws)
                    taps.append(rolled[key])
            patches = jnp.concatenate(taps, axis=0)
            acc = jnp.dot(w_ref[...], patches, preferred_element_type=jnp.float32)
            acc = acc + b_ref[...]
            if relu:
                acc = jnp.maximum(acc, 0.0)
            o_ref[2 * py + px] = acc.astype(o_ref.dtype)


# ---------------------------------------------------------------------------
# pallas_call wrappers (5 launches per forward pass)
# ---------------------------------------------------------------------------
def _full_spec(shape):
    zeros = (0,) * len(shape)
    return pl.BlockSpec(shape, lambda i: zeros)


def _pad_lanes(x2d, dtype=ACT_DTYPE):
    c, m = x2d.shape
    mp = _round_up(m, LANE)
    x2d = x2d.astype(dtype)
    if mp != m:
        x2d = jnp.pad(x2d, ((0, 0), (0, mp - m)))
    return x2d


def conv3x3(x_slab, w, b, geom, *, relu, out_dtype=ACT_DTYPE):
    """Plain 3x3 conv on a flattened slab; zero XLA glue."""
    _n, hs, ws = geom
    cin, mp = x_slab.shape
    cout = w.shape[0]
    kern = functools.partial(_conv_kernel, ws=ws, relu=relu)
    return pl.pallas_call(
        kern,
        out_shape=jax.ShapeDtypeStruct((cout, mp), out_dtype),
        grid=(1,),
        in_specs=[_full_spec((cout, 9 * cin)),
                  _full_spec((cout, 1)),
                  _full_spec((4, mp)),
                  _full_spec((cin, mp))],
        out_specs=_full_spec((cout, mp)),
        compiler_params=_CPARAMS,
    )(_w_mat(w), b.reshape(cout, 1).astype(jnp.float32),
      _edge_masks(hs, ws, mp), x_slab)


def conv3x3_relu_pool(x_chw, w, b):
    """Conv2d(3x3, pad 1) + ReLU + MaxPool2d(2) from a (C, N, H, W) activation."""
    cin, n, h, w_dim = x_chw.shape
    ho, wo = h // 2, w_dim // 2
    mo = n * ho * wo
    mp = _round_up(mo, LANE)
    corners = [_pad_lanes(x_chw[:, :, py::2, px::2].reshape(cin, mo))
               for py in range(2) for px in range(2)]
    cout = w.shape[0]
    kern = functools.partial(_conv_pool_kernel, ws=wo)
    out = pl.pallas_call(
        kern,
        out_shape=jax.ShapeDtypeStruct((cout, mp), ACT_DTYPE),
        grid=(1,),
        in_specs=[_full_spec((cout, 9 * cin)),
                  _full_spec((cout, 1)),
                  _full_spec((4, mp))] + [_full_spec((cin, mp))] * 4,
        out_specs=_full_spec((cout, mp)),
        compiler_params=_CPARAMS,
    )(_w_mat(w), b.reshape(cout, 1).astype(jnp.float32),
      _edge_masks(ho, wo, mp), *corners)
    return out, (n, ho, wo)


def upsample2x_conv3x3(x_slab, w, b, geom, *, relu, out_dtype=ACT_DTYPE):
    """Upsample(2, nearest) + Conv2d(3x3, pad 1) from a flattened low-res slab."""
    _n, hs, ws = geom
    cin, mp = x_slab.shape
    cout = w.shape[0]
    kern = functools.partial(_up_conv_kernel, ws=ws, relu=relu)
    return pl.pallas_call(
        kern,
        out_shape=jax.ShapeDtypeStruct((4, cout, mp), out_dtype),
        grid=(1,),
        in_specs=[_full_spec((cout, 9 * cin)),
                  _full_spec((cout, 1)),
                  _full_spec((4, mp)),
                  _full_spec((cin, mp))],
        out_specs=_full_spec((4, cout, mp)),
        compiler_params=_CPARAMS,
    )(_w_mat(w), b.reshape(cout, 1).astype(jnp.float32),
      _edge_masks(hs, ws, mp), x_slab)


# ---------------------------------------------------------------------------
# Thin XLA glue (only at resolution changes; ~1x activation each)
# ---------------------------------------------------------------------------
def _unflatten(slab, c, geom):
    n, hs, ws = geom
    return slab[:, :n * hs * ws].reshape(c, n, hs, ws)


def _interleave(pstack, c, geom):
    """(4, C, Mp) parity slabs -> (C, N, 2*Hs, 2*Ws) full-res activation."""
    n, hs, ws = geom
    m = n * hs * ws
    p = pstack[:, :, :m].reshape(2, 2, c, n, hs, ws)
    p = jnp.transpose(p, (2, 3, 4, 0, 5, 1))          # (C, N, Hs, 2, Ws, 2)
    return p.reshape(c, n, 2 * hs, 2 * ws)


# ---------------------------------------------------------------------------
# Parameters (deterministic; PyTorch Conv2d shapes: W=(Cout,Cin,3,3), b=(Cout,))
# ---------------------------------------------------------------------------
def init_params(key):
    layer_dims = [(1, 8), (8, 12), (12, 16), (16, 12), (12, 3)]
    params = []
    for i, (cin, cout) in enumerate(layer_dims):
        kw, kb = jax.random.split(jax.random.fold_in(key, i))
        bound = 1.0 / ((cin * 9) ** 0.5)
        w = jax.random.uniform(kw, (cout, cin, 3, 3), jnp.float32, -bound, bound)
        b = jax.random.uniform(kb, (cout,), jnp.float32, -bound, bound)
        params.append((w, b))
    return params


# ---------------------------------------------------------------------------
# GrayToColor.forward : NCHW (N,1,H,W) -> NCHW (N,3,H,W)
# ---------------------------------------------------------------------------
def _forward_chunk(x_nchw, params):
    n, cin0, h, w_dim = x_nchw.shape
    assert cin0 == 1
    # Two MaxPool2d(2) (floor mode) + two Upsample(2): spatial dims must be
    # multiples of 4 for the decoder output to match the input resolution.
    assert h % 4 == 0 and w_dim % 4 == 0
    (w1, b1), (w2, b2), (w3, b3), (w4, b4), (w5, b5) = params

    x = jnp.transpose(x_nchw, (1, 0, 2, 3))                   # (1, N, H, W)

    # encoder
    h1, g1 = conv3x3_relu_pool(x, w1, b1)                     # (8, Mp1) @ (N, H/2, W/2)
    h2, g2 = conv3x3_relu_pool(_unflatten(h1, 8, g1), w2, b2)  # (12, Mp2) @ (N, H/4, W/4)
    h3 = conv3x3(h2, w3, b3, g2, relu=True)                   # (16, Mp2) — no glue

    # decoder
    h4p = upsample2x_conv3x3(h3, w4, b4, g2, relu=True)       # (4, 12, Mp2) parity slabs
    h4 = _interleave(h4p, 12, g2)                             # (12, N, H/2, W/2)
    h4s = _pad_lanes(h4.reshape(12, n * (h // 2) * (w_dim // 2)))
    h5p = upsample2x_conv3x3(h4s, w5, b5, g1, relu=False, out_dtype=jnp.float32)
    y = _interleave(h5p, 3, g1)                               # (3, N, H, W) f32
    return jnp.transpose(y, (1, 0, 2, 3))                     # (N, 3, H, W)


def gray_to_color_forward(x_nchw, params):
    n = x_nchw.shape[0]
    hw = x_nchw.shape[2] * x_nchw.shape[3]
    imgs = max(1, _MAX_LANES_PER_CALL // hw)                  # bound per-call VMEM
    if n <= imgs:
        return _forward_chunk(x_nchw, params)
    chunks = [_forward_chunk(x_nchw[i:i + imgs], params) for i in range(0, n, imgs)]
    return jnp.concatenate(chunks, axis=0)
    # TODO(synk): fit()/test_error() are host-side training/eval loops, out of scope.


# ---------------------------------------------------------------------------
# Pure-JAX reference (XLA conv) for a correctness sanity check
# ---------------------------------------------------------------------------
def _ref_forward(x_nchw, params):
    def conv(x, w, b):
        y = jax.lax.conv_general_dilated(
            x, w, window_strides=(1, 1), padding=((1, 1), (1, 1)),
            dimension_numbers=("NCHW", "OIHW", "NCHW"))
        return y + b.reshape(1, -1, 1, 1)

    def pool(x):
        return jax.lax.reduce_window(x, -jnp.inf, jax.lax.max,
                                     (1, 1, 2, 2), (1, 1, 2, 2), "VALID")

    up = lambda x: jnp.repeat(jnp.repeat(x, 2, axis=2), 2, axis=3)
    (w1, b1), (w2, b2), (w3, b3), (w4, b4), (w5, b5) = params
    h = pool(jax.nn.relu(conv(x_nchw, w1, b1)))
    h = pool(jax.nn.relu(conv(h, w2, b2)))
    h = jax.nn.relu(conv(h, w3, b3))
    h = jax.nn.relu(conv(up(h), w4, b4))
    return conv(up(h), w5, b5)


if __name__ == "__main__":
    key = jax.random.PRNGKey(0)
    params = init_params(jax.random.fold_in(key, 100))
    x = jax.random.uniform(jax.random.fold_in(key, 1), (2, 1, 16, 16), jnp.float32)

    fwd = jax.jit(lambda xx: gray_to_color_forward(xx, params))
    y = fwd(x)
    jax.block_until_ready(y)
    assert y.shape == (2, 3, 16, 16), y.shape
    assert y.dtype == jnp.float32

    y_ref = jax.jit(lambda xx: _ref_forward(xx, params))(x)
    err = float(jnp.max(jnp.abs(y - y_ref)))
    scale = float(jnp.max(jnp.abs(y_ref)))
    # bf16 inter-layer streams (f32 accumulation) => small absolute error expected.
    assert err <= 2e-2 + 5e-2 * scale, (err, scale)

    print("KERNEL_OK")
</pallas_src>

<mosaic_0001>
module attributes {stable_mosaic.version = 11 : i64} {
  func.func @_conv_pool_kernel(%arg0: i32, %arg1: memref<12x72xf32, #tpu.memory_space<vmem>>, %arg2: memref<12x1xf32, #tpu.memory_space<vmem>>, %arg3: memref<4x128xf32, #tpu.memory_space<vmem>>, %arg4: memref<8x128xbf16, #tpu.memory_space<vmem>>, %arg5: memref<8x128xbf16, #tpu.memory_space<vmem>>, %arg6: memref<8x128xbf16, #tpu.memory_space<vmem>>, %arg7: memref<8x128xbf16, #tpu.memory_space<vmem>>, %arg8: memref<12x128xbf16, #tpu.memory_space<vmem>>) attributes {dimension_semantics = [#tpu.dimension_semantics<arbitrary>], iteration_bounds = array<i64: 1>, scalar_prefetch = 0 : i64, scratch_operands = 0 : i64, tpu.core_type = #tpu.core_type<tc>, window_params = [{pipeline_mode = #tpu.pipeline_mode<synchronous>, transform_indices = @transform_0, window_bounds = array<i64: 12, 72>}, {pipeline_mode = #tpu.pipeline_mode<synchronous>, transform_indices = @transform_1, window_bounds = array<i64: 12, 1>}, {pipeline_mode = #tpu.pipeline_mode<synchronous>, transform_indices = @transform_2, window_bounds = array<i64: 4, 128>}, {pipeline_mode = #tpu.pipeline_mode<synchronous>, transform_indices = @transform_3, window_bounds = array<i64: 8, 128>}, {pipeline_mode = #tpu.pipeline_mode<synchronous>, transform_indices = @transform_4, window_bounds = array<i64: 8, 128>}, {pipeline_mode = #tpu.pipeline_mode<synchronous>, transform_indices = @transform_5, window_bounds = array<i64: 8, 128>}, {pipeline_mode = #tpu.pipeline_mode<synchronous>, transform_indices = @transform_6, window_bounds = array<i64: 8, 128>}, {pipeline_mode = #tpu.pipeline_mode<synchronous>, transform_indices = @transform_7, window_bounds = array<i64: 12, 128>}]} {
    %c0 = arith.constant 0 : index
    %c0_0 = arith.constant 0 : index
    %0 = vector.load %arg4[%c0, %c0_0] : memref<8x128xbf16, #tpu.memory_space<vmem>>, vector<8x128xbf16>
    %1 = arith.extf %0 : vector<8x128xbf16> to vector<8x128xf32>
    %c0_1 = arith.constant 0 : index
    %c0_2 = arith.constant 0 : index
    %2 = vector.load %arg5[%c0_1, %c0_2] : memref<8x128xbf16, #tpu.memory_space<vmem>>, vector<8x128xbf16>
    %3 = arith.extf %2 : vector<8x128xbf16> to vector<8x128xf32>
    %c0_3 = arith.constant 0 : index
    %c0_4 = arith.constant 0 : index
    %4 = vector.load %arg6[%c0_3, %c0_4] : memref<8x128xbf16, #tpu.memory_space<vmem>>, vector<8x128xbf16>
    %5 = arith.extf %4 : vector<8x128xbf16> to vector<8x128xf32>
    %c0_5 = arith.constant 0 : index
    %c0_6 = arith.constant 0 : index
    %6 = vector.load %arg7[%c0_5, %c0_6] : memref<8x128xbf16, #tpu.memory_space<vmem>>, vector<8x128xbf16>
    %7 = arith.extf %6 : vector<8x128xbf16> to vector<8x128xf32>
    %c0_7 = arith.constant 0 : index
    %c0_8 = arith.constant 0 : index
    %8 = vector.load %arg3[%c0_7, %c0_8] : memref<4x128xf32, #tpu.memory_space<vmem>>, vector<4x128xf32>
    %c5_i32 = arith.constant 5 : i32
    %9 = tpu.dynamic_rotate %7 by %c5_i32 dim 1 : vector<8x128xf32>, i32 -> vector<8x128xf32>
    %10 = vector.extract_strided_slice %8 {offsets = [0, 0], sizes = [1, 128], strides = [1, 1]} : vector<4x128xf32> to vector<1x128xf32>
    %11 = vector.broadcast %10 : vector<1x128xf32> to vector<8x128xf32>
    %12 = arith.mulf %9, %11 : vector<8x128xf32>
    %13 = vector.extract_strided_slice %8 {offsets = [2, 0], sizes = [1, 128], strides = [1, 1]} : vector<4x128xf32> to vector<1x128xf32>
    %14 = vector.broadcast %13 : vector<1x128xf32> to vector<8x128xf32>
    %15 = arith.mulf %12, %14 : vector<8x128xf32>
    %c4_i32 = arith.constant 4 : i32
    %16 = tpu.dynamic_rotate %5 by %c4_i32 dim 1 : vector<8x128xf32>, i32 -> vector<8x128xf32>
    %17 = vector.extract_strided_slice %8 {offsets = [0, 0], sizes = [1, 128], strides = [1, 1]} : vector<4x128xf32> to vector<1x128xf32>
    %18 = vector.broadcast %17 : vector<1x128xf32> to vector<8x128xf32>
    %19 = arith.mulf %16, %18 : vector<8x128xf32>
    %c4_i32_9 = arith.constant 4 : i32
    %20 = tpu.dynamic_rotate %7 by %c4_i32_9 dim 1 : vector<8x128xf32>, i32 -> vector<8x128xf32>
    %21 = vector.extract_strided_slice %8 {offsets = [0, 0], sizes = [1, 128], strides = [1, 1]} : vector<4x128xf32> to vector<1x128xf32>
    %22 = vector.broadcast %21 : vector<1x128xf32> to vector<8x128xf32>
    %23 = arith.mulf %20, %22 : vector<8x128xf32>
    %c1_i32 = arith.constant 1 : i32
    %24 = tpu.dynamic_rotate %3 by %c1_i32 dim 1 : vector<8x128xf32>, i32 -> vector<8x128xf32>
    %25 = vector.extract_strided_slice %8 {offsets = [2, 0], sizes = [1, 128], strides = [1, 1]} : vector<4x128xf32> to vector<1x128xf32>
    %26 = vector.broadcast %25 : vector<1x128xf32> to vector<8x128xf32>
    %27 = arith.mulf %24, %26 : vector<8x128xf32>
    %c1_i32_10 = arith.constant 1 : i32
    %28 = tpu.dynamic_rotate %7 by %c1_i32_10 dim 1 : vector<8x128xf32>, i32 -> vector<8x128xf32>
    %29 = vector.extract_strided_slice %8 {offsets = [2, 0], sizes = [1, 128], strides = [1, 1]} : vector<4x128xf32> to vector<1x128xf32>
    %30 = vector.broadcast %29 : vector<1x128xf32> to vector<8x128xf32>
    %31 = arith.mulf %28, %30 : vector<8x128xf32>
    %32 = tpu.concatenate %15, %19, %23, %27, %1, %3, %31, %5, %7 in 0 : vector<8x128xf32>, vector<8x128xf32>, vector<8x128xf32>, vector<8x128xf32>, vector<8x128xf32>, vector<8x128xf32>, vector<8x128xf32>, vector<8x128xf32>, vector<8x128xf32> -> vector<72x128xf32>
    %c0_11 = arith.constant 0 : index
    %c0_12 = arith.constant 0 : index
    %33 = vector.load %arg1[%c0_11, %c0_12] : memref<12x72xf32, #tpu.memory_space<vmem>>, vector<12x72xf32>
    %cst = arith.constant dense<0.000000e+00> : vector<12x128xf32>
    %34 = tpu.matmul %33, %32, %cst {dimension_numbers = #tpu.dot_dimension_numbers<[1], [0], [0], [1], [0, 0, 1, 1], [], []>} : vector<12x72xf32>, vector<72x128xf32>, vector<12x128xf32> -> vector<12x128xf32>
    %c3_i32 = arith.constant 3 : i32
    %35 = tpu.dynamic_rotate %5 by %c3_i32 dim 1 : vector<8x128xf32>, i32 -> vector<8x128xf32>
    %36 = vector.extract_strided_slice %8 {offsets = [0, 0], sizes = [1, 128], strides = [1, 1]} : vector<4x128xf32> to vector<1x128xf32>
    %37 = vector.broadcast %36 : vector<1x128xf32> to vector<8x128xf32>
    %38 = arith.mulf %35, %37 : vector<8x128xf32>
    %39 = vector.extract_strided_slice %8 {offsets = [3, 0], sizes = [1, 128], strides = [1, 1]} : vector<4x128xf32> to vector<1x128xf32>
    %40 = vector.broadcast %39 : vector<1x128xf32> to vector<8x128xf32>
    %41 = arith.mulf %38, %40 : vector<8x128xf32>
    %c127_i32 = arith.constant 127 : i32
    %42 = tpu.dynamic_rotate %1 by %c127_i32 dim 1 : vector<8x128xf32>, i32 -> vector<8x128xf32>
    %43 = vector.extract_strided_slice %8 {offsets = [3, 0], sizes = [1, 128], strides = [1, 1]} : vector<4x128xf32> to vector<1x128xf32>
    %44 = vector.broadcast %43 : vector<1x128xf32> to vector<8x128xf32>
    %45 = arith.mulf %42, %44 : vector<8x128xf32>
    %c127_i32_13 = arith.constant 127 : i32
    %46 = tpu.dynamic_rotate %5 by %c127_i32_13 dim 1 : vector<8x128xf32>, i32 -> vector<8x128xf32>
    %47 = vector.extract_strided_slice %8 {offsets = [3, 0], sizes = [1, 128], strides = [1, 1]} : vector<4x128xf32> to vector<1x128xf32>
    %48 = vector.broadcast %47 : vector<1x128xf32> to vector<8x128xf32>
    %49 = arith.mulf %46, %48 : vector<8x128xf32>
    %50 = tpu.concatenate %19, %23, %41, %1, %3, %45, %5, %7, %49 in 0 : vector<8x128xf32>, vector<8x128xf32>, vector<8x128xf32>, vector<8x128xf32>, vector<8x128xf32>, vector<8x128xf32>, vector<8x128xf32>, vector<8x128xf32>, vector<8x128xf32> -> vector<72x128xf32>
    %c0_14 = arith.constant 0 : index
    %c0_15 = arith.constant 0 : index
    %51 = vector.load %arg1[%c0_14, %c0_15] : memref<12x72xf32, #tpu.memory_space<vmem>>, vector<12x72xf32>
    %cst_16 = arith.constant dense<0.000000e+00> : vector<12x128xf32>
    %52 = tpu.matmul %51, %50, %cst_16 {dimension_numbers = #tpu.dot_dimension_numbers<[1], [0], [0], [1], [0, 0, 1, 1], [], []>} : vector<12x72xf32>, vector<72x128xf32>, vector<12x128xf32> -> vector<12x128xf32>
    %53 = arith.maximumf %34, %52 : vector<12x128xf32>
    %c125_i32 = arith.constant 125 : i32
    %54 = tpu.dynamic_rotate %3 by %c125_i32 dim 1 : vector<8x128xf32>, i32 -> vector<8x128xf32>
    %55 = vector.extract_strided_slice %8 {offsets = [1, 0], sizes = [1, 128], strides = [1, 1]} : vector<4x128xf32> to vector<1x128xf32>
    %56 = vector.broadcast %55 : vector<1x128xf32> to vector<8x128xf32>
    %57 = arith.mulf %54, %56 : vector<8x128xf32>
    %58 = vector.extract_strided_slice %8 {offsets = [2, 0], sizes = [1, 128], strides = [1, 1]} : vector<4x128xf32> to vector<1x128xf32>
    %59 = vector.broadcast %58 : vector<1x128xf32> to vector<8x128xf32>
    %60 = arith.mulf %57, %59 : vector<8x128xf32>
    %c124_i32 = arith.constant 124 : i32
    %61 = tpu.dynamic_rotate %1 by %c124_i32 dim 1 : vector<8x128xf32>, i32 -> vector<8x128xf32>
    %62 = vector.extract_strided_slice %8 {offsets = [1, 0], sizes = [1, 128], strides = [1, 1]} : vector<4x128xf32> to vector<1x128xf32>
    %63 = vector.broadcast %62 : vector<1x128xf32> to vector<8x128xf32>
    %64 = arith.mulf %61, %63 : vector<8x128xf32>
    %c124_i32_17 = arith.constant 124 : i32
    %65 = tpu.dynamic_rotate %3 by %c124_i32_17 dim 1 : vector<8x128xf32>, i32 -> vector<8x128xf32>
    %66 = vector.extract_strided_slice %8 {offsets = [1, 0], sizes = [1, 128], strides = [1, 1]} : vector<4x128xf32> to vector<1x128xf32>
    %67 = vector.broadcast %66 : vector<1x128xf32> to vector<8x128xf32>
    %68 = arith.mulf %65, %67 : vector<8x128xf32>
    %69 = tpu.concatenate %27, %1, %3, %31, %5, %7, %60, %64, %68 in 0 : vector<8x128xf32>, vector<8x128xf32>, vector<8x128xf32>, vector<8x128xf32>, vector<8x128xf32>, vector<8x128xf32>, vector<8x128xf32>, vector<8x128xf32>, vector<8x128xf32> -> vector<72x128xf32>
    %c0_18 = arith.constant 0 : index
    %c0_19 = arith.constant 0 : index
    %70 = vector.load %arg1[%c0_18, %c0_19] : memref<12x72xf32, #tpu.memory_space<vmem>>, vector<12x72xf32>
    %cst_20 = arith.constant dense<0.000000e+00> : vector<12x128xf32>
    %71 = tpu.matmul %70, %69, %cst_20 {dimension_numbers = #tpu.dot_dimension_numbers<[1], [0], [0], [1], [0, 0, 1, 1], [], []>} : vector<12x72xf32>, vector<72x128xf32>, vector<12x128xf32> -> vector<12x128xf32>
    %72 = arith.maximumf %53, %71 : vector<12x128xf32>
    %c123_i32 = arith.constant 123 : i32
    %73 = tpu.dynamic_rotate %1 by %c123_i32 dim 1 : vector<8x128xf32>, i32 -> vector<8x128xf32>
    %74 = vector.extract_strided_slice %8 {offsets = [1, 0], sizes = [1, 128], strides = [1, 1]} : vector<4x128xf32> to vector<1x128xf32>
    %75 = vector.broadcast %74 : vector<1x128xf32> to vector<8x128xf32>
    %76 = arith.mulf %73, %75 : vector<8x128xf32>
    %77 = vector.extract_strided_slice %8 {offsets = [3, 0], sizes = [1, 128], strides = [1, 1]} : vector<4x128xf32> to vector<1x128xf32>
    %78 = vector.broadcast %77 : vector<1x128xf32> to vector<8x128xf32>
    %79 = arith.mulf %76, %78 : vector<8x128xf32>
    %80 = tpu.concatenate %1, %3, %45, %5, %7, %49, %64, %68, %79 in 0 : vector<8x128xf32>, vector<8x128xf32>, vector<8x128xf32>, vector<8x128xf32>, vector<8x128xf32>, vector<8x128xf32>, vector<8x128xf32>, vector<8x128xf32>, vector<8x128xf32> -> vector<72x128xf32>
    %c0_21 = arith.constant 0 : index
    %c0_22 = arith.constant 0 : index
    %81 = vector.load %arg1[%c0_21, %c0_22] : memref<12x72xf32, #tpu.memory_space<vmem>>, vector<12x72xf32>
    %cst_23 = arith.constant dense<0.000000e+00> : vector<12x128xf32>
    %82 = tpu.matmul %81, %80, %cst_23 {dimension_numbers = #tpu.dot_dimension_numbers<[1], [0], [0], [1], [0, 0, 1, 1], [], []>} : vector<12x72xf32>, vector<72x128xf32>, vector<12x128xf32> -> vector<12x128xf32>
    %83 = arith.maximumf %72, %82 : vector<12x128xf32>
    %c0_24 = arith.constant 0 : index
    %c0_25 = arith.constant 0 : index
    %84 = vector.load %arg2[%c0_24, %c0_25] : memref<12x1xf32, #tpu.memory_space<vmem>>, vector<12x1xf32>
    %85 = vector.broadcast %84 : vector<12x1xf32> to vector<12x128xf32>
    %86 = arith.addf %83, %85 : vector<12x128xf32>
    %cst_26 = arith.constant 0.000000e+00 : f32
    %87 = vector.broadcast %cst_26 : f32 to vector<12x128xf32>
    %88 = arith.maximumf %86, %87 : vector<12x128xf32>
    %89 = arith.truncf %88 : vector<12x128xf32> to vector<12x128xbf16>
    %c0_27 = arith.constant 0 : index
    %c0_28 = arith.constant 0 : index
    %90 = vector.load %arg8[%c0_27, %c0_28] : memref<12x128xbf16, #tpu.memory_space<vmem>>, vector<12x128xbf16>
    tpu.vector_store %arg8[%c0_27, %c0_28], %89 {strides = array<i32>} : memref<12x128xbf16, #tpu.memory_space<vmem>>, vector<12x128xbf16>,
    return
  }
  func.func @transform_0(%arg0: i32) -> (i32, i32) {
    %c0_i32 = arith.constant 0 : i32
    %c0_i32_0 = arith.constant 0 : i32
    %c0_i32_1 = arith.constant 0 : i32
    return %c0_i32, %c0_i32_0 : i32, i32
  }
  func.func @transform_1(%arg0: i32) -> (i32, i32) {
    %c0_i32 = arith.constant 0 : i32
    %c0_i32_0 = arith.constant 0 : i32
    %c0_i32_1 = arith.constant 0 : i32
    return %c0_i32, %c0_i32_0 : i32, i32
  }
  func.func @transform_2(%arg0: i32) -> (i32, i32) {
    %c0_i32 = arith.constant 0 : i32
    %c0_i32_0 = arith.constant 0 : i32
    %c0_i32_1 = arith.constant 0 : i32
    return %c0_i32, %c0_i32_0 : i32, i32
  }
  func.func @transform_3(%arg0: i32) -> (i32, i32) {
    %c0_i32 = arith.constant 0 : i32
    %c0_i32_0 = arith.constant 0 : i32
    %c0_i32_1 = arith.constant 0 : i32
    return %c0_i32, %c0_i32_0 : i32, i32
  }
  func.func @transform_4(%arg0: i32) -> (i32, i32) {
    %c0_i32 = arith.constant 0 : i32
    %c0_i32_0 = arith.constant 0 : i32
    %c0_i32_1 = arith.constant 0 : i32
    return %c0_i32, %c0_i32_0 : i32, i32
  }
  func.func @transform_5(%arg0: i32) -> (i32, i32) {
    %c0_i32 = arith.constant 0 : i32
    %c0_i32_0 = arith.constant 0 : i32
    %c0_i32_1 = arith.constant 0 : i32
    return %c0_i32, %c0_i32_0 : i32, i32
  }
  func.func @transform_6(%arg0: i32) -> (i32, i32) {
    %c0_i32 = arith.constant 0 : i32
    %c0_i32_0 = arith.constant 0 : i32
    %c0_i32_1 = arith.constant 0 : i32
    return %c0_i32, %c0_i32_0 : i32, i32
  }
  func.func @transform_7(%arg0: i32) -> (i32, i32) {
    %c0_i32 = arith.constant 0 : i32
    %c0_i32_0 = arith.constant 0 : i32
    %c0_i32_1 = arith.constant 0 : i32
    return %c0_i32, %c0_i32_0 : i32, i32
  }
}

module attributes {stable_mosaic.version = 11 : i64} {
  func.func @_conv_pool_kernel(%arg0: i32, %arg1: memref<8x9xf32, #tpu.memory_space<vmem>>, %arg2: memref<8x1xf32, #tpu.memory_space<vmem>>, %arg3: memref<4x128xf32, #tpu.memory_space<vmem>>, %arg4: memref<1x128xbf16, #tpu.memory_space<vmem>>, %arg5: memref<1x128xbf16, #tpu.memory_space<vmem>>, %arg6: memref<1x128xbf16, #tpu.memory_space<vmem>>, %arg7: memref<1x128xbf16, #tpu.memory_space<vmem>>, %arg8: memref<8x128xbf16, #tpu.memory_space<vmem>>) attributes {dimension_semantics = [#tpu.dimension_semantics<arbitrary>], iteration_bounds = array<i64: 1>, scalar_prefetch = 0 : i64, scratch_operands = 0 : i64, tpu.core_type = #tpu.core_type<tc>, window_params = [{pipeline_mode = #tpu.pipeline_mode<synchronous>, transform_indices = @transform_0, window_bounds = array<i64: 8, 9>}, {pipeline_mode = #tpu.pipeline_mode<synchronous>, transform_indices = @transform_1, window_bounds = array<i64: 8, 1>}, {pipeline_mode = #tpu.pipeline_mode<synchronous>, transform_indices = @transform_2, window_bounds = array<i64: 4, 128>}, {pipeline_mode = #tpu.pipeline_mode<synchronous>, transform_indices = @transform_3, window_bounds = array<i64: 1, 128>}, {pipeline_mode = #tpu.pipeline_mode<synchronous>, transform_indices = @transform_4, window_bounds = array<i64: 1, 128>}, {pipeline_mode = #tpu.pipeline_mode<synchronous>, transform_indices = @transform_5, window_bounds = array<i64: 1, 128>}, {pipeline_mode = #tpu.pipeline_mode<synchronous>, transform_indices = @transform_6, window_bounds = array<i64: 1, 128>}, {pipeline_mode = #tpu.pipeline_mode<synchronous>, transform_indices = @transform_7, window_bounds = array<i64: 8, 128>}]} {
    %c0 = arith.constant 0 : index
    %c0_0 = arith.constant 0 : index
    %0 = vector.load %arg4[%c0, %c0_0] : memref<1x128xbf16, #tpu.memory_space<vmem>>, vector<1x128xbf16>
    %1 = arith.extf %0 : vector<1x128xbf16> to vector<1x128xf32>
    %c0_1 = arith.constant 0 : index
    %c0_2 = arith.constant 0 : index
    %2 = vector.load %arg5[%c0_1, %c0_2] : memref<1x128xbf16, #tpu.memory_space<vmem>>, vector<1x128xbf16>
    %3 = arith.extf %2 : vector<1x128xbf16> to vector<1x128xf32>
    %c0_3 = arith.constant 0 : index
    %c0_4 = arith.constant 0 : index
    %4 = vector.load %arg6[%c0_3, %c0_4] : memref<1x128xbf16, #tpu.memory_space<vmem>>, vector<1x128xbf16>
    %5 = arith.extf %4 : vector<1x128xbf16> to vector<1x128xf32>
    %c0_5 = arith.constant 0 : index
    %c0_6 = arith.constant 0 : index
    %6 = vector.load %arg7[%c0_5, %c0_6] : memref<1x128xbf16, #tpu.memory_space<vmem>>, vector<1x128xbf16>
    %7 = arith.extf %6 : vector<1x128xbf16> to vector<1x128xf32>
    %c0_7 = arith.constant 0 : index
    %c0_8 = arith.constant 0 : index
    %8 = vector.load %arg3[%c0_7, %c0_8] : memref<4x128xf32, #tpu.memory_space<vmem>>, vector<4x128xf32>
    %c9_i32 = arith.constant 9 : i32
    %9 = tpu.dynamic_rotate %7 by %c9_i32 dim 1 : vector<1x128xf32>, i32 -> vector<1x128xf32>
    %10 = vector.extract_strided_slice %8 {offsets = [0, 0], sizes = [1, 128], strides = [1, 1]} : vector<4x128xf32> to vector<1x128xf32>
    %11 = arith.mulf %9, %10 : vector<1x128xf32>
    %12 = vector.extract_strided_slice %8 {offsets = [2, 0], sizes = [1, 128], strides = [1, 1]} : vector<4x128xf32> to vector<1x128xf32>
    %13 = arith.mulf %11, %12 : vector<1x128xf32>
    %c8_i32 = arith.constant 8 : i32
    %14 = tpu.dynamic_rotate %5 by %c8_i32 dim 1 : vector<1x128xf32>, i32 -> vector<1x128xf32>
    %15 = vector.extract_strided_slice %8 {offsets = [0, 0], sizes = [1, 128], strides = [1, 1]} : vector<4x128xf32> to vector<1x128xf32>
    %16 = arith.mulf %14, %15 : vector<1x128xf32>
    %c8_i32_9 = arith.constant 8 : i32
    %17 = tpu.dynamic_rotate %7 by %c8_i32_9 dim 1 : vector<1x128xf32>, i32 -> vector<1x128xf32>
    %18 = vector.extract_strided_slice %8 {offsets = [0, 0], sizes = [1, 128], strides = [1, 1]} : vector<4x128xf32> to vector<1x128xf32>
    %19 = arith.mulf %17, %18 : vector<1x128xf32>
    %c1_i32 = arith.constant 1 : i32
    %20 = tpu.dynamic_rotate %3 by %c1_i32 dim 1 : vector<1x128xf32>, i32 -> vector<1x128xf32>
    %21 = vector.extract_strided_slice %8 {offsets = [2, 0], sizes = [1, 128], strides = [1, 1]} : vector<4x128xf32> to vector<1x128xf32>
    %22 = arith.mulf %20, %21 : vector<1x128xf32>
    %c1_i32_10 = arith.constant 1 : i32
    %23 = tpu.dynamic_rotate %7 by %c1_i32_10 dim 1 : vector<1x128xf32>, i32 -> vector<1x128xf32>
    %24 = vector.extract_strided_slice %8 {offsets = [2, 0], sizes = [1, 128], strides = [1, 1]} : vector<4x128xf32> to vector<1x128xf32>
    %25 = arith.mulf %23, %24 : vector<1x128xf32>
    %26 = tpu.concatenate %13, %16, %19, %22, %1, %3, %25, %5, %7 in 0 : vector<1x128xf32>, vector<1x128xf32>, vector<1x128xf32>, vector<1x128xf32>, vector<1x128xf32>, vector<1x128xf32>, vector<1x128xf32>, vector<1x128xf32>, vector<1x128xf32> -> vector<9x128xf32>
    %c0_11 = arith.constant 0 : index
    %c0_12 = arith.constant 0 : index
    %27 = vector.load %arg1[%c0_11, %c0_12] : memref<8x9xf32, #tpu.memory_space<vmem>>, vector<8x9xf32>
    %cst = arith.constant dense<0.000000e+00> : vector<8x128xf32>
    %28 = tpu.matmul %27, %26, %cst {dimension_numbers = #tpu.dot_dimension_numbers<[1], [0], [0], [1], [0, 0, 1, 1], [], []>} : vector<8x9xf32>, vector<9x128xf32>, vector<8x128xf32> -> vector<8x128xf32>
    %c7_i32 = arith.constant 7 : i32
    %29 = tpu.dynamic_rotate %5 by %c7_i32 dim 1 : vector<1x128xf32>, i32 -> vector<1x128xf32>
    %30 = vector.extract_strided_slice %8 {offsets = [0, 0], sizes = [1, 128], strides = [1, 1]} : vector<4x128xf32> to vector<1x128xf32>
    %31 = arith.mulf %29, %30 : vector<1x128xf32>
    %32 = vector.extract_strided_slice %8 {offsets = [3, 0], sizes = [1, 128], strides = [1, 1]} : vector<4x128xf32> to vector<1x128xf32>
    %33 = arith.mulf %31, %32 : vector<1x128xf32>
    %c127_i32 = arith.constant 127 : i32
    %34 = tpu.dynamic_rotate %1 by %c127_i32 dim 1 : vector<1x128xf32>, i32 -> vector<1x128xf32>
    %35 = vector.extract_strided_slice %8 {offsets = [3, 0], sizes = [1, 128], strides = [1, 1]} : vector<4x128xf32> to vector<1x128xf32>
    %36 = arith.mulf %34, %35 : vector<1x128xf32>
    %c127_i32_13 = arith.constant 127 : i32
    %37 = tpu.dynamic_rotate %5 by %c127_i32_13 dim 1 : vector<1x128xf32>, i32 -> vector<1x128xf32>
    %38 = vector.extract_strided_slice %8 {offsets = [3, 0], sizes = [1, 128], strides = [1, 1]} : vector<4x128xf32> to vector<1x128xf32>
    %39 = arith.mulf %37, %38 : vector<1x128xf32>
    %40 = tpu.concatenate %16, %19, %33, %1, %3, %36, %5, %7, %39 in 0 : vector<1x128xf32>, vector<1x128xf32>, vector<1x128xf32>, vector<1x128xf32>, vector<1x128xf32>, vector<1x128xf32>, vector<1x128xf32>, vector<1x128xf32>, vector<1x128xf32> -> vector<9x128xf32>
    %c0_14 = arith.constant 0 : index
    %c0_15 = arith.constant 0 : index
    %41 = vector.load %arg1[%c0_14, %c0_15] : memref<8x9xf32, #tpu.memory_space<vmem>>, vector<8x9xf32>
    %cst_16 = arith.constant dense<0.000000e+00> : vector<8x128xf32>
    %42 = tpu.matmul %41, %40, %cst_16 {dimension_numbers = #tpu.dot_dimension_numbers<[1], [0], [0], [1], [0, 0, 1, 1], [], []>} : vector<8x9xf32>, vector<9x128xf32>, vector<8x128xf32> -> vector<8x128xf32>
    %43 = arith.maximumf %28, %42 : vector<8x128xf32>
    %c121_i32 = arith.constant 121 : i32
    %44 = tpu.dynamic_rotate %3 by %c121_i32 dim 1 : vector<1x128xf32>, i32 -> vector<1x128xf32>
    %45 = vector.extract_strided_slice %8 {offsets = [1, 0], sizes = [1, 128], strides = [1, 1]} : vector<4x128xf32> to vector<1x128xf32>
    %46 = arith.mulf %44, %45 : vector<1x128xf32>
    %47 = vector.extract_strided_slice %8 {offsets = [2, 0], sizes = [1, 128], strides = [1, 1]} : vector<4x128xf32> to vector<1x128xf32>
    %48 = arith.mulf %46, %47 : vector<1x128xf32>
    %c120_i32 = arith.constant 120 : i32
    %49 = tpu.dynamic_rotate %1 by %c120_i32 dim 1 : vector<1x128xf32>, i32 -> vector<1x128xf32>
    %50 = vector.extract_strided_slice %8 {offsets = [1, 0], sizes = [1, 128], strides = [1, 1]} : vector<4x128xf32> to vector<1x128xf32>
    %51 = arith.mulf %49, %50 : vector<1x128xf32>
    %c120_i32_17 = arith.constant 120 : i32
    %52 = tpu.dynamic_rotate %3 by %c120_i32_17 dim 1 : vector<1x128xf32>, i32 -> vector<1x128xf32>
    %53 = vector.extract_strided_slice %8 {offsets = [1, 0], sizes = [1, 128], strides = [1, 1]} : vector<4x128xf32> to vector<1x128xf32>
    %54 = arith.mulf %52, %53 : vector<1x128xf32>
    %55 = tpu.concatenate %22, %1, %3, %25, %5, %7, %48, %51, %54 in 0 : vector<1x128xf32>, vector<1x128xf32>, vector<1x128xf32>, vector<1x128xf32>, vector<1x128xf32>, vector<1x128xf32>, vector<1x128xf32>, vector<1x128xf32>, vector<1x128xf32> -> vector<9x128xf32>
    %c0_18 = arith.constant 0 : index
    %c0_19 = arith.constant 0 : index
    %56 = vector.load %arg1[%c0_18, %c0_19] : memref<8x9xf32, #tpu.memory_space<vmem>>, vector<8x9xf32>
    %cst_20 = arith.constant dense<0.000000e+00> : vector<8x128xf32>
    %57 = tpu.matmul %56, %55, %cst_20 {dimension_numbers = #tpu.dot_dimension_numbers<[1], [0], [0], [1], [0, 0, 1, 1], [], []>} : vector<8x9xf32>, vector<9x128xf32>, vector<8x128xf32> -> vector<8x128xf32>
    %58 = arith.maximumf %43, %57 : vector<8x128xf32>
    %c119_i32 = arith.constant 119 : i32
    %59 = tpu.dynamic_rotate %1 by %c119_i32 dim 1 : vector<1x128xf32>, i32 -> vector<1x128xf32>
    %60 = vector.extract_strided_slice %8 {offsets = [1, 0], sizes = [1, 128], strides = [1, 1]} : vector<4x128xf32> to vector<1x128xf32>
    %61 = arith.mulf %59, %60 : vector<1x128xf32>
    %62 = vector.extract_strided_slice %8 {offsets = [3, 0], sizes = [1, 128], strides = [1, 1]} : vector<4x128xf32> to vector<1x128xf32>
    %63 = arith.mulf %61, %62 : vector<1x128xf32>
    %64 = tpu.concatenate %1, %3, %36, %5, %7, %39, %51, %54, %63 in 0 : vector<1x128xf32>, vector<1x128xf32>, vector<1x128xf32>, vector<1x128xf32>, vector<1x128xf32>, vector<1x128xf32>, vector<1x128xf32>, vector<1x128xf32>, vector<1x128xf32> -> vector<9x128xf32>
    %c0_21 = arith.constant 0 : index
    %c0_22 = arith.constant 0 : index
    %65 = vector.load %arg1[%c0_21, %c0_22] : memref<8x9xf32, #tpu.memory_space<vmem>>, vector<8x9xf32>
    %cst_23 = arith.constant dense<0.000000e+00> : vector<8x128xf32>
    %66 = tpu.matmul %65, %64, %cst_23 {dimension_numbers = #tpu.dot_dimension_numbers<[1], [0], [0], [1], [0, 0, 1, 1], [], []>} : vector<8x9xf32>, vector<9x128xf32>, vector<8x128xf32> -> vector<8x128xf32>
    %67 = arith.maximumf %58, %66 : vector<8x128xf32>
    %c0_24 = arith.constant 0 : index
    %c0_25 = arith.constant 0 : index
    %68 = vector.load %arg2[%c0_24, %c0_25] : memref<8x1xf32, #tpu.memory_space<vmem>>, vector<8x1xf32>
    %69 = vector.broadcast %68 : vector<8x1xf32> to vector<8x128xf32>
    %70 = arith.addf %67, %69 : vector<8x128xf32>
    %cst_26 = arith.constant 0.000000e+00 : f32
    %71 = vector.broadcast %cst_26 : f32 to vector<8x128xf32>
    %72 = arith.maximumf %70, %71 : vector<8x128xf32>
    %73 = arith.truncf %72 : vector<8x128xf32> to vector<8x128xbf16>
    %c0_27 = arith.constant 0 : index
    %c0_28 = arith.constant 0 : index
    %74 = vector.load %arg8[%c0_27, %c0_28] : memref<8x128xbf16, #tpu.memory_space<vmem>>, vector<8x128xbf16>
    tpu.vector_store %arg8[%c0_27, %c0_28], %73 {strides = array<i32>} : memref<8x128xbf16, #tpu.memory_space<vmem>>, vector<8x128xbf16>,
    return
  }
  func.func @transform_0(%arg0: i32) -> (i32, i32) {
    %c0_i32 = arith.constant 0 : i32
    %c0_i32_0 = arith.constant 0 : i32
    %c0_i32_1 = arith.constant 0 : i32
    return %c0_i32, %c0_i32_0 : i32, i32
  }
  func.func @transform_1(%arg0: i32) -> (i32, i32) {
    %c0_i32 = arith.constant 0 : i32
    %c0_i32_0 = arith.constant 0 : i32
    %c0_i32_1 = arith.constant 0 : i32
    return %c0_i32, %c0_i32_0 : i32, i32
  }
  func.func @transform_2(%arg0: i32) -> (i32, i32) {
    %c0_i32 = arith.constant 0 : i32
    %c0_i32_0 = arith.constant 0 : i32
    %c0_i32_1 = arith.constant 0 : i32
    return %c0_i32, %c0_i32_0 : i32, i32
  }
  func.func @transform_3(%arg0: i32) -> (i32, i32) {
    %c0_i32 = arith.constant 0 : i32
    %c0_i32_0 = arith.constant 0 : i32
    %c0_i32_1 = arith.constant 0 : i32
    return %c0_i32, %c0_i32_0 : i32, i32
  }
  func.func @transform_4(%arg0: i32) -> (i32, i32) {
    %c0_i32 = arith.constant 0 : i32
    %c0_i32_0 = arith.constant 0 : i32
    %c0_i32_1 = arith.constant 0 : i32
    return %c0_i32, %c0_i32_0 : i32, i32
  }
  func.func @transform_5(%arg0: i32) -> (i32, i32) {
    %c0_i32 = arith.constant 0 : i32
    %c0_i32_0 = arith.constant 0 : i32
    %c0_i32_1 = arith.constant 0 : i32
    return %c0_i32, %c0_i32_0 : i32, i32
  }
  func.func @transform_6(%arg0: i32) -> (i32, i32) {
    %c0_i32 = arith.constant 0 : i32
    %c0_i32_0 = arith.constant 0 : i32
    %c0_i32_1 = arith.constant 0 : i32
    return %c0_i32, %c0_i32_0 : i32, i32
  }
  func.func @transform_7(%arg0: i32) -> (i32, i32) {
    %c0_i32 = arith.constant 0 : i32
    %c0_i32_0 = arith.constant 0 : i32
    %c0_i32_1 = arith.constant 0 : i32
    return %c0_i32, %c0_i32_0 : i32, i32
  }
}

module attributes {stable_mosaic.version = 11 : i64} {
  func.func @_conv_kernel(%arg0: i32, %arg1: memref<16x108xf32, #tpu.memory_space<vmem>>, %arg2: memref<16x1xf32, #tpu.memory_space<vmem>>, %arg3: memref<4x128xf32, #tpu.memory_space<vmem>>, %arg4: memref<12x128xbf16, #tpu.memory_space<vmem>>, %arg5: memref<16x128xbf16, #tpu.memory_space<vmem>>) attributes {dimension_semantics = [#tpu.dimension_semantics<arbitrary>], iteration_bounds = array<i64: 1>, scalar_prefetch = 0 : i64, scratch_operands = 0 : i64, tpu.core_type = #tpu.core_type<tc>, window_params = [{pipeline_mode = #tpu.pipeline_mode<synchronous>, transform_indices = @transform_0, window_bounds = array<i64: 16, 108>}, {pipeline_mode = #tpu.pipeline_mode<synchronous>, transform_indices = @transform_1, window_bounds = array<i64: 16, 1>}, {pipeline_mode = #tpu.pipeline_mode<synchronous>, transform_indices = @transform_2, window_bounds = array<i64: 4, 128>}, {pipeline_mode = #tpu.pipeline_mode<synchronous>, transform_indices = @transform_3, window_bounds = array<i64: 12, 128>}, {pipeline_mode = #tpu.pipeline_mode<synchronous>, transform_indices = @transform_4, window_bounds = array<i64: 16, 128>}]} {
    %c0 = arith.constant 0 : index
    %c0_0 = arith.constant 0 : index
    %0 = vector.load %arg4[%c0, %c0_0] : memref<12x128xbf16, #tpu.memory_space<vmem>>, vector<12x128xbf16>
    %1 = arith.extf %0 : vector<12x128xbf16> to vector<12x128xf32>
    %c0_1 = arith.constant 0 : index
    %c0_2 = arith.constant 0 : index
    %2 = vector.load %arg3[%c0_1, %c0_2] : memref<4x128xf32, #tpu.memory_space<vmem>>, vector<4x128xf32>
    %c5_i32 = arith.constant 5 : i32
    %3 = tpu.dynamic_rotate %1 by %c5_i32 dim 1 : vector<12x128xf32>, i32 -> vector<12x128xf32>
    %4 = vector.extract_strided_slice %2 {offsets = [0, 0], sizes = [1, 128], strides = [1, 1]} : vector<4x128xf32> to vector<1x128xf32>
    %5 = vector.broadcast %4 : vector<1x128xf32> to vector<12x128xf32>
    %6 = arith.mulf %3, %5 : vector<12x128xf32>
    %7 = vector.extract_strided_slice %2 {offsets = [2, 0], sizes = [1, 128], strides = [1, 1]} : vector<4x128xf32> to vector<1x128xf32>
    %8 = vector.broadcast %7 : vector<1x128xf32> to vector<12x128xf32>
    %9 = arith.mulf %6, %8 : vector<12x128xf32>
    %c4_i32 = arith.constant 4 : i32
    %10 = tpu.dynamic_rotate %1 by %c4_i32 dim 1 : vector<12x128xf32>, i32 -> vector<12x128xf32>
    %11 = vector.extract_strided_slice %2 {offsets = [0, 0], sizes = [1, 128], strides = [1, 1]} : vector<4x128xf32> to vector<1x128xf32>
    %12 = vector.broadcast %11 : vector<1x128xf32> to vector<12x128xf32>
    %13 = arith.mulf %10, %12 : vector<12x128xf32>
    %c3_i32 = arith.constant 3 : i32
    %14 = tpu.dynamic_rotate %1 by %c3_i32 dim 1 : vector<12x128xf32>, i32 -> vector<12x128xf32>
    %15 = vector.extract_strided_slice %2 {offsets = [0, 0], sizes = [1, 128], strides = [1, 1]} : vector<4x128xf32> to vector<1x128xf32>
    %16 = vector.broadcast %15 : vector<1x128xf32> to vector<12x128xf32>
    %17 = arith.mulf %14, %16 : vector<12x128xf32>
    %18 = vector.extract_strided_slice %2 {offsets = [3, 0], sizes = [1, 128], strides = [1, 1]} : vector<4x128xf32> to vector<1x128xf32>
    %19 = vector.broadcast %18 : vector<1x128xf32> to vector<12x128xf32>
    %20 = arith.mulf %17, %19 : vector<12x128xf32>
    %c1_i32 = arith.constant 1 : i32
    %21 = tpu.dynamic_rotate %1 by %c1_i32 dim 1 : vector<12x128xf32>, i32 -> vector<12x128xf32>
    %22 = vector.extract_strided_slice %2 {offsets = [2, 0], sizes = [1, 128], strides = [1, 1]} : vector<4x128xf32> to vector<1x128xf32>
    %23 = vector.broadcast %22 : vector<1x128xf32> to vector<12x128xf32>
    %24 = arith.mulf %21, %23 : vector<12x128xf32>
    %c127_i32 = arith.constant 127 : i32
    %25 = tpu.dynamic_rotate %1 by %c127_i32 dim 1 : vector<12x128xf32>, i32 -> vector<12x128xf32>
    %26 = vector.extract_strided_slice %2 {offsets = [3, 0], sizes = [1, 128], strides = [1, 1]} : vector<4x128xf32> to vector<1x128xf32>
    %27 = vector.broadcast %26 : vector<1x128xf32> to vector<12x128xf32>
    %28 = arith.mulf %25, %27 : vector<12x128xf32>
    %c125_i32 = arith.constant 125 : i32
    %29 = tpu.dynamic_rotate %1 by %c125_i32 dim 1 : vector<12x128xf32>, i32 -> vector<12x128xf32>
    %30 = vector.extract_strided_slice %2 {offsets = [1, 0], sizes = [1, 128], strides = [1, 1]} : vector<4x128xf32> to vector<1x128xf32>
    %31 = vector.broadcast %30 : vector<1x128xf32> to vector<12x128xf32>
    %32 = arith.mulf %29, %31 : vector<12x128xf32>
    %33 = vector.extract_strided_slice %2 {offsets = [2, 0], sizes = [1, 128], strides = [1, 1]} : vector<4x128xf32> to vector<1x128xf32>
    %34 = vector.broadcast %33 : vector<1x128xf32> to vector<12x128xf32>
    %35 = arith.mulf %32, %34 : vector<12x128xf32>
    %c124_i32 = arith.constant 124 : i32
    %36 = tpu.dynamic_rotate %1 by %c124_i32 dim 1 : vector<12x128xf32>, i32 -> vector<12x128xf32>
    %37 = vector.extract_strided_slice %2 {offsets = [1, 0], sizes = [1, 128], strides = [1, 1]} : vector<4x128xf32> to vector<1x128xf32>
    %38 = vector.broadcast %37 : vector<1x128xf32> to vector<12x128xf32>
    %39 = arith.mulf %36, %38 : vector<12x128xf32>
    %c123_i32 = arith.constant 123 : i32
    %40 = tpu.dynamic_rotate %1 by %c123_i32 dim 1 : vector<12x128xf32>, i32 -> vector<12x128xf32>
    %41 = vector.extract_strided_slice %2 {offsets = [1, 0], sizes = [1, 128], strides = [1, 1]} : vector<4x128xf32> to vector<1x128xf32>
    %42 = vector.broadcast %41 : vector<1x128xf32> to vector<12x128xf32>
    %43 = arith.mulf %40, %42 : vector<12x128xf32>
    %44 = vector.extract_strided_slice %2 {offsets = [3, 0], sizes = [1, 128], strides = [1, 1]} : vector<4x128xf32> to vector<1x128xf32>
    %45 = vector.broadcast %44 : vector<1x128xf32> to vector<12x128xf32>
    %46 = arith.mulf %43, %45 : vector<12x128xf32>
    %47 = tpu.concatenate %9, %13, %20, %24, %1, %28, %35, %39, %46 in 0 : vector<12x128xf32>, vector<12x128xf32>, vector<12x128xf32>, vector<12x128xf32>, vector<12x128xf32>, vector<12x128xf32>, vector<12x128xf32>, vector<12x128xf32>, vector<12x128xf32> -> vector<108x128xf32>
    %c0_3 = arith.constant 0 : index
    %c0_4 = arith.constant 0 : index
    %48 = vector.load %arg1[%c0_3, %c0_4] : memref<16x108xf32, #tpu.memory_space<vmem>>, vector<16x108xf32>
    %cst = arith.constant dense<0.000000e+00> : vector<16x128xf32>
    %49 = tpu.matmul %48, %47, %cst {dimension_numbers = #tpu.dot_dimension_numbers<[1], [0], [0], [1], [0, 0, 1, 1], [], []>} : vector<16x108xf32>, vector<108x128xf32>, vector<16x128xf32> -> vector<16x128xf32>
    %c0_5 = arith.constant 0 : index
    %c0_6 = arith.constant 0 : index
    %50 = vector.load %arg2[%c0_5, %c0_6] : memref<16x1xf32, #tpu.memory_space<vmem>>, vector<16x1xf32>
    %51 = vector.broadcast %50 : vector<16x1xf32> to vector<16x128xf32>
    %52 = arith.addf %49, %51 : vector<16x128xf32>
    %cst_7 = arith.constant 0.000000e+00 : f32
    %53 = vector.broadcast %cst_7 : f32 to vector<16x128xf32>
    %54 = arith.maximumf %52, %53 : vector<16x128xf32>
    %55 = arith.truncf %54 : vector<16x128xf32> to vector<16x128xbf16>
    %c0_8 = arith.constant 0 : index
    %c0_9 = arith.constant 0 : index
    %56 = vector.load %arg5[%c0_8, %c0_9] : memref<16x128xbf16, #tpu.memory_space<vmem>>, vector<16x128xbf16>
    tpu.vector_store %arg5[%c0_8, %c0_9], %55 {strides = array<i32>} : memref<16x128xbf16, #tpu.memory_space<vmem>>, vector<16x128xbf16>,
    return
  }
  func.func @transform_0(%arg0: i32) -> (i32, i32) {
    %c0_i32 = arith.constant 0 : i32
    %c0_i32_0 = arith.constant 0 : i32
    %c0_i32_1 = arith.constant 0 : i32
    return %c0_i32, %c0_i32_0 : i32, i32
  }
  func.func @transform_1(%arg0: i32) -> (i32, i32) {
    %c0_i32 = arith.constant 0 : i32
    %c0_i32_0 = arith.constant 0 : i32
    %c0_i32_1 = arith.constant 0 : i32
    return %c0_i32, %c0_i32_0 : i32, i32
  }
  func.func @transform_2(%arg0: i32) -> (i32, i32) {
    %c0_i32 = arith.constant 0 : i32
    %c0_i32_0 = arith.constant 0 : i32
    %c0_i32_1 = arith.constant 0 : i32
    return %c0_i32, %c0_i32_0 : i32, i32
  }
  func.func @transform_3(%arg0: i32) -> (i32, i32) {
    %c0_i32 = arith.constant 0 : i32
    %c0_i32_0 = arith.constant 0 : i32
    %c0_i32_1 = arith.constant 0 : i32
    return %c0_i32, %c0_i32_0 : i32, i32
  }
  func.func @transform_4(%arg0: i32) -> (i32, i32) {
    %c0_i32 = arith.constant 0 : i32
    %c0_i32_0 = arith.constant 0 : i32
    %c0_i32_1 = arith.constant 0 : i32
    return %c0_i32, %c0_i32_0 : i32, i32
  }
}

module attributes {stable_mosaic.version = 11 : i64} {
  func.func @_up_conv_kernel(%arg0: i32, %arg1: memref<12x144xf32, #tpu.memory_space<vmem>>, %arg2: memref<12x1xf32, #tpu.memory_space<vmem>>, %arg3: memref<4x128xf32, #tpu.memory_space<vmem>>, %arg4: memref<16x128xbf16, #tpu.memory_space<vmem>>, %arg5: memref<4x12x128xbf16, #tpu.memory_space<vmem>>) attributes {dimension_semantics = [#tpu.dimension_semantics<arbitrary>], iteration_bounds = array<i64: 1>, scalar_prefetch = 0 : i64, scratch_operands = 0 : i64, tpu.core_type = #tpu.core_type<tc>, window_params = [{pipeline_mode = #tpu.pipeline_mode<synchronous>, transform_indices = @transform_0, window_bounds = array<i64: 12, 144>}, {pipeline_mode = #tpu.pipeline_mode<synchronous>, transform_indices = @transform_1, window_bounds = array<i64: 12, 1>}, {pipeline_mode = #tpu.pipeline_mode<synchronous>, transform_indices = @transform_2, window_bounds = array<i64: 4, 128>}, {pipeline_mode = #tpu.pipeline_mode<synchronous>, transform_indices = @transform_3, window_bounds = array<i64: 16, 128>}, {pipeline_mode = #tpu.pipeline_mode<synchronous>, transform_indices = @transform_4, window_bounds = array<i64: 4, 12, 128>}]} {
    %c0 = arith.constant 0 : index
    %c0_0 = arith.constant 0 : index
    %0 = vector.load %arg4[%c0, %c0_0] : memref<16x128xbf16, #tpu.memory_space<vmem>>, vector<16x128xbf16>
    %1 = arith.extf %0 : vector<16x128xbf16> to vector<16x128xf32>
    %c0_1 = arith.constant 0 : index
    %c0_2 = arith.constant 0 : index
    %2 = vector.load %arg3[%c0_1, %c0_2] : memref<4x128xf32, #tpu.memory_space<vmem>>, vector<4x128xf32>
    %c5_i32 = arith.constant 5 : i32
    %3 = tpu.dynamic_rotate %1 by %c5_i32 dim 1 : vector<16x128xf32>, i32 -> vector<16x128xf32>
    %4 = vector.extract_strided_slice %2 {offsets = [0, 0], sizes = [1, 128], strides = [1, 1]} : vector<4x128xf32> to vector<1x128xf32>
    %5 = vector.broadcast %4 : vector<1x128xf32> to vector<16x128xf32>
    %6 = arith.mulf %3, %5 : vector<16x128xf32>
    %7 = vector.extract_strided_slice %2 {offsets = [2, 0], sizes = [1, 128], strides = [1, 1]} : vector<4x128xf32> to vector<1x128xf32>
    %8 = vector.broadcast %7 : vector<1x128xf32> to vector<16x128xf32>
    %9 = arith.mulf %6, %8 : vector<16x128xf32>
    %c4_i32 = arith.constant 4 : i32
    %10 = tpu.dynamic_rotate %1 by %c4_i32 dim 1 : vector<16x128xf32>, i32 -> vector<16x128xf32>
    %11 = vector.extract_strided_slice %2 {offsets = [0, 0], sizes = [1, 128], strides = [1, 1]} : vector<4x128xf32> to vector<1x128xf32>
    %12 = vector.broadcast %11 : vector<1x128xf32> to vector<16x128xf32>
    %13 = arith.mulf %10, %12 : vector<16x128xf32>
    %c1_i32 = arith.constant 1 : i32
    %14 = tpu.dynamic_rotate %1 by %c1_i32 dim 1 : vector<16x128xf32>, i32 -> vector<16x128xf32>
    %15 = vector.extract_strided_slice %2 {offsets = [2, 0], sizes = [1, 128], strides = [1, 1]} : vector<4x128xf32> to vector<1x128xf32>
    %16 = vector.broadcast %15 : vector<1x128xf32> to vector<16x128xf32>
    %17 = arith.mulf %14, %16 : vector<16x128xf32>
    %18 = tpu.concatenate %9, %13, %13, %17, %1, %1, %17, %1, %1 in 0 : vector<16x128xf32>, vector<16x128xf32>, vector<16x128xf32>, vector<16x128xf32>, vector<16x128xf32>, vector<16x128xf32>, vector<16x128xf32>, vector<16x128xf32>, vector<16x128xf32> -> vector<144x128xf32>
    %c0_3 = arith.constant 0 : index
    %c0_4 = arith.constant 0 : index
    %19 = vector.load %arg1[%c0_3, %c0_4] : memref<12x144xf32, #tpu.memory_space<vmem>>, vector<12x144xf32>
    %cst = arith.constant dense<0.000000e+00> : vector<12x128xf32>
    %20 = tpu.matmul %19, %18, %cst {dimension_numbers = #tpu.dot_dimension_numbers<[1], [0], [0], [1], [0, 0, 1, 1], [], []>} : vector<12x144xf32>, vector<144x128xf32>, vector<12x128xf32> -> vector<12x128xf32>
    %c0_5 = arith.constant 0 : index
    %c0_6 = arith.constant 0 : index
    %21 = vector.load %arg2[%c0_5, %c0_6] : memref<12x1xf32, #tpu.memory_space<vmem>>, vector<12x1xf32>
    %22 = vector.broadcast %21 : vector<12x1xf32> to vector<12x128xf32>
    %23 = arith.addf %20, %22 : vector<12x128xf32>
    %cst_7 = arith.constant 0.000000e+00 : f32
    %24 = vector.broadcast %cst_7 : f32 to vector<12x128xf32>
    %25 = arith.maximumf %23, %24 : vector<12x128xf32>
    %26 = arith.truncf %25 : vector<12x128xf32> to vector<12x128xbf16>
    %c0_8 = arith.constant 0 : index
    %c0_9 = arith.constant 0 : index
    %c0_10 = arith.constant 0 : index
    %27 = vector.load %arg5[%c0_8, %c0_9, %c0_10] : memref<4x12x128xbf16, #tpu.memory_space<vmem>>, vector<1x12x128xbf16>
    %28 = vector.shape_cast %27 : vector<1x12x128xbf16> to vector<12x128xbf16>
    %29 = vector.shape_cast %26 : vector<12x128xbf16> to vector<1x12x128xbf16>
    tpu.vector_store %arg5[%c0_8, %c0_9, %c0_10], %29 {strides = array<i32>} : memref<4x12x128xbf16, #tpu.memory_space<vmem>>, vector<1x12x128xbf16>,
    %c3_i32 = arith.constant 3 : i32
    %30 = tpu.dynamic_rotate %1 by %c3_i32 dim 1 : vector<16x128xf32>, i32 -> vector<16x128xf32>
    %31 = vector.extract_strided_slice %2 {offsets = [0, 0], sizes = [1, 128], strides = [1, 1]} : vector<4x128xf32> to vector<1x128xf32>
    %32 = vector.broadcast %31 : vector<1x128xf32> to vector<16x128xf32>
    %33 = arith.mulf %30, %32 : vector<16x128xf32>
    %34 = vector.extract_strided_slice %2 {offsets = [3, 0], sizes = [1, 128], strides = [1, 1]} : vector<4x128xf32> to vector<1x128xf32>
    %35 = vector.broadcast %34 : vector<1x128xf32> to vector<16x128xf32>
    %36 = arith.mulf %33, %35 : vector<16x128xf32>
    %c127_i32 = arith.constant 127 : i32
    %37 = tpu.dynamic_rotate %1 by %c127_i32 dim 1 : vector<16x128xf32>, i32 -> vector<16x128xf32>
    %38 = vector.extract_strided_slice %2 {offsets = [3, 0], sizes = [1, 128], strides = [1, 1]} : vector<4x128xf32> to vector<1x128xf32>
    %39 = vector.broadcast %38 : vector<1x128xf32> to vector<16x128xf32>
    %40 = arith.mulf %37, %39 : vector<16x128xf32>
    %41 = tpu.concatenate %13, %13, %36, %1, %1, %40, %1, %1, %40 in 0 : vector<16x128xf32>, vector<16x128xf32>, vector<16x128xf32>, vector<16x128xf32>, vector<16x128xf32>, vector<16x128xf32>, vector<16x128xf32>, vector<16x128xf32>, vector<16x128xf32> -> vector<144x128xf32>
    %c0_11 = arith.constant 0 : index
    %c0_12 = arith.constant 0 : index
    %42 = vector.load %arg1[%c0_11, %c0_12] : memref<12x144xf32, #tpu.memory_space<vmem>>, vector<12x144xf32>
    %cst_13 = arith.constant dense<0.000000e+00> : vector<12x128xf32>
    %43 = tpu.matmul %42, %41, %cst_13 {dimension_numbers = #tpu.dot_dimension_numbers<[1], [0], [0], [1], [0, 0, 1, 1], [], []>} : vector<12x144xf32>, vector<144x128xf32>, vector<12x128xf32> -> vector<12x128xf32>
    %c0_14 = arith.constant 0 : index
    %c0_15 = arith.constant 0 : index
    %44 = vector.load %arg2[%c0_14, %c0_15] : memref<12x1xf32, #tpu.memory_space<vmem>>, vector<12x1xf32>
    %45 = vector.broadcast %44 : vector<12x1xf32> to vector<12x128xf32>
    %46 = arith.addf %43, %45 : vector<12x128xf32>
    %cst_16 = arith.constant 0.000000e+00 : f32
    %47 = vector.broadcast %cst_16 : f32 to vector<12x128xf32>
    %48 = arith.maximumf %46, %47 : vector<12x128xf32>
    %49 = arith.truncf %48 : vector<12x128xf32> to vector<12x128xbf16>
    %c1 = arith.constant 1 : index
    %c0_17 = arith.constant 0 : index
    %c0_18 = arith.constant 0 : index
    %50 = vector.load %arg5[%c1, %c0_17, %c0_18] : memref<4x12x128xbf16, #tpu.memory_space<vmem>>, vector<1x12x128xbf16>
    %51 = vector.shape_cast %50 : vector<1x12x128xbf16> to vector<12x128xbf16>
    %52 = vector.shape_cast %49 : vector<12x128xbf16> to vector<1x12x128xbf16>
    tpu.vector_store %arg5[%c1, %c0_17, %c0_18], %52 {strides = array<i32>} : memref<4x12x128xbf16, #tpu.memory_space<vmem>>, vector<1x12x128xbf16>,
    %c125_i32 = arith.constant 125 : i32
    %53 = tpu.dynamic_rotate %1 by %c125_i32 dim 1 : vector<16x128xf32>, i32 -> vector<16x128xf32>
    %54 = vector.extract_strided_slice %2 {offsets = [1, 0], sizes = [1, 128], strides = [1, 1]} : vector<4x128xf32> to vector<1x128xf32>
    %55 = vector.broadcast %54 : vector<1x128xf32> to vector<16x128xf32>
    %56 = arith.mulf %53, %55 : vector<16x128xf32>
    %57 = vector.extract_strided_slice %2 {offsets = [2, 0], sizes = [1, 128], strides = [1, 1]} : vector<4x128xf32> to vector<1x128xf32>
    %58 = vector.broadcast %57 : vector<1x128xf32> to vector<16x128xf32>
    %59 = arith.mulf %56, %58 : vector<16x128xf32>
    %c124_i32 = arith.constant 124 : i32
    %60 = tpu.dynamic_rotate %1 by %c124_i32 dim 1 : vector<16x128xf32>, i32 -> vector<16x128xf32>
    %61 = vector.extract_strided_slice %2 {offsets = [1, 0], sizes = [1, 128], strides = [1, 1]} : vector<4x128xf32> to vector<1x128xf32>
    %62 = vector.broadcast %61 : vector<1x128xf32> to vector<16x128xf32>
    %63 = arith.mulf %60, %62 : vector<16x128xf32>
    %64 = tpu.concatenate %17, %1, %1, %17, %1, %1, %59, %63, %63 in 0 : vector<16x128xf32>, vector<16x128xf32>, vector<16x128xf32>, vector<16x128xf32>, vector<16x128xf32>, vector<16x128xf32>, vector<16x128xf32>, vector<16x128xf32>, vector<16x128xf32> -> vector<144x128xf32>
    %c0_19 = arith.constant 0 : index
    %c0_20 = arith.constant 0 : index
    %65 = vector.load %arg1[%c0_19, %c0_20] : memref<12x144xf32, #tpu.memory_space<vmem>>, vector<12x144xf32>
    %cst_21 = arith.constant dense<0.000000e+00> : vector<12x128xf32>
    %66 = tpu.matmul %65, %64, %cst_21 {dimension_numbers = #tpu.dot_dimension_numbers<[1], [0], [0], [1], [0, 0, 1, 1], [], []>} : vector<12x144xf32>, vector<144x128xf32>, vector<12x128xf32> -> vector<12x128xf32>
    %c0_22 = arith.constant 0 : index
    %c0_23 = arith.constant 0 : index
    %67 = vector.load %arg2[%c0_22, %c0_23] : memref<12x1xf32, #tpu.memory_space<vmem>>, vector<12x1xf32>
    %68 = vector.broadcast %67 : vector<12x1xf32> to vector<12x128xf32>
    %69 = arith.addf %66, %68 : vector<12x128xf32>
    %cst_24 = arith.constant 0.000000e+00 : f32
    %70 = vector.broadcast %cst_24 : f32 to vector<12x128xf32>
    %71 = arith.maximumf %69, %70 : vector<12x128xf32>
    %72 = arith.truncf %71 : vector<12x128xf32> to vector<12x128xbf16>
    %c2 = arith.constant 2 : index
    %c0_25 = arith.constant 0 : index
    %c0_26 = arith.constant 0 : index
    %73 = vector.load %arg5[%c2, %c0_25, %c0_26] : memref<4x12x128xbf16, #tpu.memory_space<vmem>>, vector<1x12x128xbf16>
    %74 = vector.shape_cast %73 : vector<1x12x128xbf16> to vector<12x128xbf16>
    %75 = vector.shape_cast %72 : vector<12x128xbf16> to vector<1x12x128xbf16>
    tpu.vector_store %arg5[%c2, %c0_25, %c0_26], %75 {strides = array<i32>} : memref<4x12x128xbf16, #tpu.memory_space<vmem>>, vector<1x12x128xbf16>,
    %c123_i32 = arith.constant 123 : i32
    %76 = tpu.dynamic_rotate %1 by %c123_i32 dim 1 : vector<16x128xf32>, i32 -> vector<16x128xf32>
    %77 = vector.extract_strided_slice %2 {offsets = [1, 0], sizes = [1, 128], strides = [1, 1]} : vector<4x128xf32> to vector<1x128xf32>
    %78 = vector.broadcast %77 : vector<1x128xf32> to vector<16x128xf32>
    %79 = arith.mulf %76, %78 : vector<16x128xf32>
    %80 = vector.extract_strided_slice %2 {offsets = [3, 0], sizes = [1, 128], strides = [1, 1]} : vector<4x128xf32> to vector<1x128xf32>
    %81 = vector.broadcast %80 : vector<1x128xf32> to vector<16x128xf32>
    %82 = arith.mulf %79, %81 : vector<16x128xf32>
    %83 = tpu.concatenate %1, %1, %40, %1, %1, %40, %63, %63, %82 in 0 : vector<16x128xf32>, vector<16x128xf32>, vector<16x128xf32>, vector<16x128xf32>, vector<16x128xf32>, vector<16x128xf32>, vector<16x128xf32>, vector<16x128xf32>, vector<16x128xf32> -> vector<144x128xf32>
    %c0_27 = arith.constant 0 : index
    %c0_28 = arith.constant 0 : index
    %84 = vector.load %arg1[%c0_27, %c0_28] : memref<12x144xf32, #tpu.memory_space<vmem>>, vector<12x144xf32>
    %cst_29 = arith.constant dense<0.000000e+00> : vector<12x128xf32>
    %85 = tpu.matmul %84, %83, %cst_29 {dimension_numbers = #tpu.dot_dimension_numbers<[1], [0], [0], [1], [0, 0, 1, 1], [], []>} : vector<12x144xf32>, vector<144x128xf32>, vector<12x128xf32> -> vector<12x128xf32>
    %c0_30 = arith.constant 0 : index
    %c0_31 = arith.constant 0 : index
    %86 = vector.load %arg2[%c0_30, %c0_31] : memref<12x1xf32, #tpu.memory_space<vmem>>, vector<12x1xf32>
    %87 = vector.broadcast %86 : vector<12x1xf32> to vector<12x128xf32>
    %88 = arith.addf %85, %87 : vector<12x128xf32>
    %cst_32 = arith.constant 0.000000e+00 : f32
    %89 = vector.broadcast %cst_32 : f32 to vector<12x128xf32>
    %90 = arith.maximumf %88, %89 : vector<12x128xf32>
    %91 = arith.truncf %90 : vector<12x128xf32> to vector<12x128xbf16>
    %c3 = arith.constant 3 : index
    %c0_33 = arith.constant 0 : index
    %c0_34 = arith.constant 0 : index
    %92 = vector.load %arg5[%c3, %c0_33, %c0_34] : memref<4x12x128xbf16, #tpu.memory_space<vmem>>, vector<1x12x128xbf16>
    %93 = vector.shape_cast %92 : vector<1x12x128xbf16> to vector<12x128xbf16>
    %94 = vector.shape_cast %91 : vector<12x128xbf16> to vector<1x12x128xbf16>
    tpu.vector_store %arg5[%c3, %c0_33, %c0_34], %94 {strides = array<i32>} : memref<4x12x128xbf16, #tpu.memory_space<vmem>>, vector<1x12x128xbf16>,
    return
  }
  func.func @transform_0(%arg0: i32) -> (i32, i32) {
    %c0_i32 = arith.constant 0 : i32
    %c0_i32_0 = arith.constant 0 : i32
    %c0_i32_1 = arith.constant 0 : i32
    return %c0_i32, %c0_i32_0 : i32, i32
  }
  func.func @transform_1(%arg0: i32) -> (i32, i32) {
    %c0_i32 = arith.constant 0 : i32
    %c0_i32_0 = arith.constant 0 : i32
    %c0_i32_1 = arith.constant 0 : i32
    return %c0_i32, %c0_i32_0 : i32, i32
  }
  func.func @transform_2(%arg0: i32) -> (i32, i32) {
    %c0_i32 = arith.constant 0 : i32
    %c0_i32_0 = arith.constant 0 : i32
    %c0_i32_1 = arith.constant 0 : i32
    return %c0_i32, %c0_i32_0 : i32, i32
  }
  func.func @transform_3(%arg0: i32) -> (i32, i32) {
    %c0_i32 = arith.constant 0 : i32
    %c0_i32_0 = arith.constant 0 : i32
    %c0_i32_1 = arith.constant 0 : i32
    return %c0_i32, %c0_i32_0 : i32, i32
  }
  func.func @transform_4(%arg0: i32) -> (i32, i32, i32) {
    %c0_i32 = arith.constant 0 : i32
    %c0_i32_0 = arith.constant 0 : i32
    %c0_i32_1 = arith.constant 0 : i32
    %c0_i32_2 = arith.constant 0 : i32
    return %c0_i32, %c0_i32_0, %c0_i32_1 : i32, i32, i32
  }
}

module attributes {stable_mosaic.version = 11 : i64} {
  func.func @_up_conv_kernel(%arg0: i32, %arg1: memref<3x108xf32, #tpu.memory_space<vmem>>, %arg2: memref<3x1xf32, #tpu.memory_space<vmem>>, %arg3: memref<4x128xf32, #tpu.memory_space<vmem>>, %arg4: memref<12x128xbf16, #tpu.memory_space<vmem>>, %arg5: memref<4x3x128xf32, #tpu.memory_space<vmem>>) attributes {dimension_semantics = [#tpu.dimension_semantics<arbitrary>], iteration_bounds = array<i64: 1>, scalar_prefetch = 0 : i64, scratch_operands = 0 : i64, tpu.core_type = #tpu.core_type<tc>, window_params = [{pipeline_mode = #tpu.pipeline_mode<synchronous>, transform_indices = @transform_0, window_bounds = array<i64: 3, 108>}, {pipeline_mode = #tpu.pipeline_mode<synchronous>, transform_indices = @transform_1, window_bounds = array<i64: 3, 1>}, {pipeline_mode = #tpu.pipeline_mode<synchronous>, transform_indices = @transform_2, window_bounds = array<i64: 4, 128>}, {pipeline_mode = #tpu.pipeline_mode<synchronous>, transform_indices = @transform_3, window_bounds = array<i64: 12, 128>}, {pipeline_mode = #tpu.pipeline_mode<synchronous>, transform_indices = @transform_4, window_bounds = array<i64: 4, 3, 128>}]} {
    %c0 = arith.constant 0 : index
    %c0_0 = arith.constant 0 : index
    %0 = vector.load %arg4[%c0, %c0_0] : memref<12x128xbf16, #tpu.memory_space<vmem>>, vector<12x128xbf16>
    %1 = arith.extf %0 : vector<12x128xbf16> to vector<12x128xf32>
    %c0_1 = arith.constant 0 : index
    %c0_2 = arith.constant 0 : index
    %2 = vector.load %arg3[%c0_1, %c0_2] : memref<4x128xf32, #tpu.memory_space<vmem>>, vector<4x128xf32>
    %c9_i32 = arith.constant 9 : i32
    %3 = tpu.dynamic_rotate %1 by %c9_i32 dim 1 : vector<12x128xf32>, i32 -> vector<12x128xf32>
    %4 = vector.extract_strided_slice %2 {offsets = [0, 0], sizes = [1, 128], strides = [1, 1]} : vector<4x128xf32> to vector<1x128xf32>
    %5 = vector.broadcast %4 : vector<1x128xf32> to vector<12x128xf32>
    %6 = arith.mulf %3, %5 : vector<12x128xf32>
    %7 = vector.extract_strided_slice %2 {offsets = [2, 0], sizes = [1, 128], strides = [1, 1]} : vector<4x128xf32> to vector<1x128xf32>
    %8 = vector.broadcast %7 : vector<1x128xf32> to vector<12x128xf32>
    %9 = arith.mulf %6, %8 : vector<12x128xf32>
    %c8_i32 = arith.constant 8 : i32
    %10 = tpu.dynamic_rotate %1 by %c8_i32 dim 1 : vector<12x128xf32>, i32 -> vector<12x128xf32>
    %11 = vector.extract_strided_slice %2 {offsets = [0, 0], sizes = [1, 128], strides = [1, 1]} : vector<4x128xf32> to vector<1x128xf32>
    %12 = vector.broadcast %11 : vector<1x128xf32> to vector<12x128xf32>
    %13 = arith.mulf %10, %12 : vector<12x128xf32>
    %c1_i32 = arith.constant 1 : i32
    %14 = tpu.dynamic_rotate %1 by %c1_i32 dim 1 : vector<12x128xf32>, i32 -> vector<12x128xf32>
    %15 = vector.extract_strided_slice %2 {offsets = [2, 0], sizes = [1, 128], strides = [1, 1]} : vector<4x128xf32> to vector<1x128xf32>
    %16 = vector.broadcast %15 : vector<1x128xf32> to vector<12x128xf32>
    %17 = arith.mulf %14, %16 : vector<12x128xf32>
    %18 = tpu.concatenate %9, %13, %13, %17, %1, %1, %17, %1, %1 in 0 : vector<12x128xf32>, vector<12x128xf32>, vector<12x128xf32>, vector<12x128xf32>, vector<12x128xf32>, vector<12x128xf32>, vector<12x128xf32>, vector<12x128xf32>, vector<12x128xf32> -> vector<108x128xf32>
    %c0_3 = arith.constant 0 : index
    %c0_4 = arith.constant 0 : index
    %19 = vector.load %arg1[%c0_3, %c0_4] : memref<3x108xf32, #tpu.memory_space<vmem>>, vector<3x108xf32>
    %cst = arith.constant dense<0.000000e+00> : vector<3x128xf32>
    %20 = tpu.matmul %19, %18, %cst {dimension_numbers = #tpu.dot_dimension_numbers<[1], [0], [0], [1], [0, 0, 1, 1], [], []>} : vector<3x108xf32>, vector<108x128xf32>, vector<3x128xf32> -> vector<3x128xf32>
    %c0_5 = arith.constant 0 : index
    %c0_6 = arith.constant 0 : index
    %21 = vector.load %arg2[%c0_5, %c0_6] : memref<3x1xf32, #tpu.memory_space<vmem>>, vector<3x1xf32>
    %22 = vector.broadcast %21 : vector<3x1xf32> to vector<3x128xf32>
    %23 = arith.addf %20, %22 : vector<3x128xf32>
    %c0_7 = arith.constant 0 : index
    %c0_8 = arith.constant 0 : index
    %c0_9 = arith.constant 0 : index
    %24 = vector.load %arg5[%c0_7, %c0_8, %c0_9] : memref<4x3x128xf32, #tpu.memory_space<vmem>>, vector<1x3x128xf32>
    %25 = vector.shape_cast %24 : vector<1x3x128xf32> to vector<3x128xf32>
    %26 = vector.shape_cast %23 : vector<3x128xf32> to vector<1x3x128xf32>
    tpu.vector_store %arg5[%c0_7, %c0_8, %c0_9], %26 {strides = array<i32>} : memref<4x3x128xf32, #tpu.memory_space<vmem>>, vector<1x3x128xf32>,
    %c7_i32 = arith.constant 7 : i32
    %27 = tpu.dynamic_rotate %1 by %c7_i32 dim 1 : vector<12x128xf32>, i32 -> vector<12x128xf32>
    %28 = vector.extract_strided_slice %2 {offsets = [0, 0], sizes = [1, 128], strides = [1, 1]} : vector<4x128xf32> to vector<1x128xf32>
    %29 = vector.broadcast %28 : vector<1x128xf32> to vector<12x128xf32>
    %30 = arith.mulf %27, %29 : vector<12x128xf32>
    %31 = vector.extract_strided_slice %2 {offsets = [3, 0], sizes = [1, 128], strides = [1, 1]} : vector<4x128xf32> to vector<1x128xf32>
    %32 = vector.broadcast %31 : vector<1x128xf32> to vector<12x128xf32>
    %33 = arith.mulf %30, %32 : vector<12x128xf32>
    %c127_i32 = arith.constant 127 : i32
    %34 = tpu.dynamic_rotate %1 by %c127_i32 dim 1 : vector<12x128xf32>, i32 -> vector<12x128xf32>
    %35 = vector.extract_strided_slice %2 {offsets = [3, 0], sizes = [1, 128], strides = [1, 1]} : vector<4x128xf32> to vector<1x128xf32>
    %36 = vector.broadcast %35 : vector<1x128xf32> to vector<12x128xf32>
    %37 = arith.mulf %34, %36 : vector<12x128xf32>
    %38 = tpu.concatenate %13, %13, %33, %1, %1, %37, %1, %1, %37 in 0 : vector<12x128xf32>, vector<12x128xf32>, vector<12x128xf32>, vector<12x128xf32>, vector<12x128xf32>, vector<12x128xf32>, vector<12x128xf32>, vector<12x128xf32>, vector<12x128xf32> -> vector<108x128xf32>
    %c0_10 = arith.constant 0 : index
    %c0_11 = arith.constant 0 : index
    %39 = vector.load %arg1[%c0_10, %c0_11] : memref<3x108xf32, #tpu.memory_space<vmem>>, vector<3x108xf32>
    %cst_12 = arith.constant dense<0.000000e+00> : vector<3x128xf32>
    %40 = tpu.matmul %39, %38, %cst_12 {dimension_numbers = #tpu.dot_dimension_numbers<[1], [0], [0], [1], [0, 0, 1, 1], [], []>} : vector<3x108xf32>, vector<108x128xf32>, vector<3x128xf32> -> vector<3x128xf32>
    %c0_13 = arith.constant 0 : index
    %c0_14 = arith.constant 0 : index
    %41 = vector.load %arg2[%c0_13, %c0_14] : memref<3x1xf32, #tpu.memory_space<vmem>>, vector<3x1xf32>
    %42 = vector.broadcast %41 : vector<3x1xf32> to vector<3x128xf32>
    %43 = arith.addf %40, %42 : vector<3x128xf32>
    %c1 = arith.constant 1 : index
    %c0_15 = arith.constant 0 : index
    %c0_16 = arith.constant 0 : index
    %44 = vector.load %arg5[%c1, %c0_15, %c0_16] : memref<4x3x128xf32, #tpu.memory_space<vmem>>, vector<1x3x128xf32>
    %45 = vector.shape_cast %44 : vector<1x3x128xf32> to vector<3x128xf32>
    %46 = vector.shape_cast %43 : vector<3x128xf32> to vector<1x3x128xf32>
    tpu.vector_store %arg5[%c1, %c0_15, %c0_16], %46 {strides = array<i32>} : memref<4x3x128xf32, #tpu.memory_space<vmem>>, vector<1x3x128xf32>,
    %c121_i32 = arith.constant 121 : i32
    %47 = tpu.dynamic_rotate %1 by %c121_i32 dim 1 : vector<12x128xf32>, i32 -> vector<12x128xf32>
    %48 = vector.extract_strided_slice %2 {offsets = [1, 0], sizes = [1, 128], strides = [1, 1]} : vector<4x128xf32> to vector<1x128xf32>
    %49 = vector.broadcast %48 : vector<1x128xf32> to vector<12x128xf32>
    %50 = arith.mulf %47, %49 : vector<12x128xf32>
    %51 = vector.extract_strided_slice %2 {offsets = [2, 0], sizes = [1, 128], strides = [1, 1]} : vector<4x128xf32> to vector<1x128xf32>
    %52 = vector.broadcast %51 : vector<1x128xf32> to vector<12x128xf32>
    %53 = arith.mulf %50, %52 : vector<12x128xf32>
    %c120_i32 = arith.constant 120 : i32
    %54 = tpu.dynamic_rotate %1 by %c120_i32 dim 1 : vector<12x128xf32>, i32 -> vector<12x128xf32>
    %55 = vector.extract_strided_slice %2 {offsets = [1, 0], sizes = [1, 128], strides = [1, 1]} : vector<4x128xf32> to vector<1x128xf32>
    %56 = vector.broadcast %55 : vector<1x128xf32> to vector<12x128xf32>
    %57 = arith.mulf %54, %56 : vector<12x128xf32>
    %58 = tpu.concatenate %17, %1, %1, %17, %1, %1, %53, %57, %57 in 0 : vector<12x128xf32>, vector<12x128xf32>, vector<12x128xf32>, vector<12x128xf32>, vector<12x128xf32>, vector<12x128xf32>, vector<12x128xf32>, vector<12x128xf32>, vector<12x128xf32> -> vector<108x128xf32>
    %c0_17 = arith.constant 0 : index
    %c0_18 = arith.constant 0 : index
    %59 = vector.load %arg1[%c0_17, %c0_18] : memref<3x108xf32, #tpu.memory_space<vmem>>, vector<3x108xf32>
    %cst_19 = arith.constant dense<0.000000e+00> : vector<3x128xf32>
    %60 = tpu.matmul %59, %58, %cst_19 {dimension_numbers = #tpu.dot_dimension_numbers<[1], [0], [0], [1], [0, 0, 1, 1], [], []>} : vector<3x108xf32>, vector<108x128xf32>, vector<3x128xf32> -> vector<3x128xf32>
    %c0_20 = arith.constant 0 : index
    %c0_21 = arith.constant 0 : index
    %61 = vector.load %arg2[%c0_20, %c0_21] : memref<3x1xf32, #tpu.memory_space<vmem>>, vector<3x1xf32>
    %62 = vector.broadcast %61 : vector<3x1xf32> to vector<3x128xf32>
    %63 = arith.addf %60, %62 : vector<3x128xf32>
    %c2 = arith.constant 2 : index
    %c0_22 = arith.constant 0 : index
    %c0_23 = arith.constant 0 : index
    %64 = vector.load %arg5[%c2, %c0_22, %c0_23] : memref<4x3x128xf32, #tpu.memory_space<vmem>>, vector<1x3x128xf32>
    %65 = vector.shape_cast %64 : vector<1x3x128xf32> to vector<3x128xf32>
    %66 = vector.shape_cast %63 : vector<3x128xf32> to vector<1x3x128xf32>
    tpu.vector_store %arg5[%c2, %c0_22, %c0_23], %66 {strides = array<i32>} : memref<4x3x128xf32, #tpu.memory_space<vmem>>, vector<1x3x128xf32>,
    %c119_i32 = arith.constant 119 : i32
    %67 = tpu.dynamic_rotate %1 by %c119_i32 dim 1 : vector<12x128xf32>, i32 -> vector<12x128xf32>
    %68 = vector.extract_strided_slice %2 {offsets = [1, 0], sizes = [1, 128], strides = [1, 1]} : vector<4x128xf32> to vector<1x128xf32>
    %69 = vector.broadcast %68 : vector<1x128xf32> to vector<12x128xf32>
    %70 = arith.mulf %67, %69 : vector<12x128xf32>
    %71 = vector.extract_strided_slice %2 {offsets = [3, 0], sizes = [1, 128], strides = [1, 1]} : vector<4x128xf32> to vector<1x128xf32>
    %72 = vector.broadcast %71 : vector<1x128xf32> to vector<12x128xf32>
    %73 = arith.mulf %70, %72 : vector<12x128xf32>
    %74 = tpu.concatenate %1, %1, %37, %1, %1, %37, %57, %57, %73 in 0 : vector<12x128xf32>, vector<12x128xf32>, vector<12x128xf32>, vector<12x128xf32>, vector<12x128xf32>, vector<12x128xf32>, vector<12x128xf32>, vector<12x128xf32>, vector<12x128xf32> -> vector<108x128xf32>
    %c0_24 = arith.constant 0 : index
    %c0_25 = arith.constant 0 : index
    %75 = vector.load %arg1[%c0_24, %c0_25] : memref<3x108xf32, #tpu.memory_space<vmem>>, vector<3x108xf32>
    %cst_26 = arith.constant dense<0.000000e+00> : vector<3x128xf32>
    %76 = tpu.matmul %75, %74, %cst_26 {dimension_numbers = #tpu.dot_dimension_numbers<[1], [0], [0], [1], [0, 0, 1, 1], [], []>} : vector<3x108xf32>, vector<108x128xf32>, vector<3x128xf32> -> vector<3x128xf32>
    %c0_27 = arith.constant 0 : index
    %c0_28 = arith.constant 0 : index
    %77 = vector.load %arg2[%c0_27, %c0_28] : memref<3x1xf32, #tpu.memory_space<vmem>>, vector<3x1xf32>
    %78 = vector.broadcast %77 : vector<3x1xf32> to vector<3x128xf32>
    %79 = arith.addf %76, %78 : vector<3x128xf32>
    %c3 = arith.constant 3 : index
    %c0_29 = arith.constant 0 : index
    %c0_30 = arith.constant 0 : index
    %80 = vector.load %arg5[%c3, %c0_29, %c0_30] : memref<4x3x128xf32, #tpu.memory_space<vmem>>, vector<1x3x128xf32>
    %81 = vector.shape_cast %80 : vector<1x3x128xf32> to vector<3x128xf32>
    %82 = vector.shape_cast %79 : vector<3x128xf32> to vector<1x3x128xf32>
    tpu.vector_store %arg5[%c3, %c0_29, %c0_30], %82 {strides = array<i32>} : memref<4x3x128xf32, #tpu.memory_space<vmem>>, vector<1x3x128xf32>,
    return
  }
  func.func @transform_0(%arg0: i32) -> (i32, i32) {
    %c0_i32 = arith.constant 0 : i32
    %c0_i32_0 = arith.constant 0 : i32
    %c0_i32_1 = arith.constant 0 : i32
    return %c0_i32, %c0_i32_0 : i32, i32
  }
  func.func @transform_1(%arg0: i32) -> (i32, i32) {
    %c0_i32 = arith.constant 0 : i32
    %c0_i32_0 = arith.constant 0 : i32
    %c0_i32_1 = arith.constant 0 : i32
    return %c0_i32, %c0_i32_0 : i32, i32
  }
  func.func @transform_2(%arg0: i32) -> (i32, i32) {
    %c0_i32 = arith.constant 0 : i32
    %c0_i32_0 = arith.constant 0 : i32
    %c0_i32_1 = arith.constant 0 : i32
    return %c0_i32, %c0_i32_0 : i32, i32
  }
  func.func @transform_3(%arg0: i32) -> (i32, i32) {
    %c0_i32 = arith.constant 0 : i32
    %c0_i32_0 = arith.constant 0 : i32
    %c0_i32_1 = arith.constant 0 : i32
    return %c0_i32, %c0_i32_0 : i32, i32
  }
  func.func @transform_4(%arg0: i32) -> (i32, i32, i32) {
    %c0_i32 = arith.constant 0 : i32
    %c0_i32_0 = arith.constant 0 : i32
    %c0_i32_1 = arith.constant 0 : i32
    %c0_i32_2 = arith.constant 0 : i32
    return %c0_i32, %c0_i32_0, %c0_i32_1 : i32, i32, i32
  }
}

</mosaic_0001>

<llo_original>
// kernel: _lambda_.6
$region0: #{_lambda_.6}
  #allocation0 [shape = 'u32[]', space=smem, size = 0x4, offset = 0x4, fixed_abs, tag = 'smem constant byte address 0x4 - core index']
  #allocation1 [shape = 'u32[72,128]{1,0:T(1,128)}', space=vmem, size = 0x9000, scoped, tag = 'internal scratch']
  %s0 = inlined_call_operand.vmem [shape: f32[12,72], index: 0, kind: input, shape index: {}]
  %s1 = inlined_call_operand.vmem [shape: f32[12,1], index: 1, kind: input, shape index: {}]
  %s2 = inlined_call_operand.vmem [shape: f32[4,128], index: 2, kind: input, shape index: {}]
  %s3 = inlined_call_operand.vmem [shape: bf16[8,128], index: 3, kind: input, shape index: {}]
  %s4 = inlined_call_operand.vmem [shape: bf16[8,128], index: 4, kind: input, shape index: {}]
  %s5 = inlined_call_operand.vmem [shape: bf16[8,128], index: 5, kind: input, shape index: {}]
  %s6 = inlined_call_operand.vmem [shape: bf16[8,128], index: 6, kind: input, shape index: {}]
  %s7 = inlined_call_operand.vmem [shape: bf16[12,128], index: 7, kind: output, shape index: {}]
  %s8 = sld [smem:[#allocation0]]
  $region38: #{_lambda_.6} parent=0
    _
  %s10 = ssub.s32 1, %s8
  %s11 = scalar_select 0, %s10, %s8
  // Predicated region
  $region2: #{_lambda_.6} parent=0 // pred_check
    _
  $region3: #{_lambda_.6} parent=0 // pred_check_branch
    %13 = sbr.rel (0) target = $region5
  $region4: #{_lambda_.6} parent=0 // pred_region
    _
  $region5: #{_lambda_.6} parent=0 // pred_fallthru
    _
  // Predicated region
  $region6: #{_lambda_.6} parent=0 // pred_check
    _
  $region7: #{_lambda_.6} parent=0 // pred_check_branch
    %15 = sbr.rel (0) target = $region9
  $region8: #{_lambda_.6} parent=0 // pred_region
    _
  $region9: #{_lambda_.6} parent=0 // pred_fallthru
    _
  // Predicated region
  $region10: #{_lambda_.6} parent=0 // pred_check
    _
  $region11: #{_lambda_.6} parent=0 // pred_check_branch
    %17 = sbr.rel (0) target = $region13
  $region12: #{_lambda_.6} parent=0 // pred_region
    _
  $region13: #{_lambda_.6} parent=0 // pred_fallthru
    _
  // Predicated region
  $region14: #{_lambda_.6} parent=0 // pred_check
    _
  $region15: #{_lambda_.6} parent=0 // pred_check_branch
    %19 = sbr.rel (0) target = $region17
  $region16: #{_lambda_.6} parent=0 // pred_region
    _
  $region17: #{_lambda_.6} parent=0 // pred_fallthru
    _
  // Predicated region
  $region18: #{_lambda_.6} parent=0 // pred_check
    _
  $region19: #{_lambda_.6} parent=0 // pred_check_branch
    %21 = sbr.rel (0) target = $region21
  $region20: #{_lambda_.6} parent=0 // pred_region
    _
  $region21: #{_lambda_.6} parent=0 // pred_fallthru
    _
  // Predicated region
  $region22: #{_lambda_.6} parent=0 // pred_check
    _
  $region23: #{_lambda_.6} parent=0 // pred_check_branch
    %23 = sbr.rel (0) target = $region25
  $region24: #{_lambda_.6} parent=0 // pred_region
    _
  $region25: #{_lambda_.6} parent=0 // pred_fallthru
    _
  // Predicated region
  $region26: #{_lambda_.6} parent=0 // pred_check
    _
  $region27: #{_lambda_.6} parent=0 // pred_check_branch
    %25 = sbr.rel (0) target = $region29
  $region28: #{_lambda_.6} parent=0 // pred_region
    _
  $region29: #{_lambda_.6} parent=0 // pred_fallthru
    _
  %v26 = vld [vmem:[%s3] sm:$0xf]
  %v27 = vunpack.c.l.bf16 %v26
  %v28 = vld [vmem:[%s4] sm:$0xf]
  %v29 = vunpack.c.l.bf16 %v28
  %v30 = vld [vmem:[%s5] sm:$0xf]
  %v31 = vunpack.c.l.bf16 %v30
  %v32 = vld [vmem:[%s6] sm:$0xf]
  %v33 = vunpack.c.l.bf16 %v32
  %v34 = vld [vmem:[%s2] sm:$0xf]
  %35 = vrot.lane.b32.xlu0 %v33, 5
  %v36 = vpop.permute.xlu0 %35
  %v37 = vperm.slane %v34, 0
  %v38 = vmul.f32 %v36, %v37
  %v39 = vperm.slane %v34, 2
  %v40 = vmul.f32 %v38, %v39
  %41 = vrot.lane.b32.xlu0 %v31, 4
  %v42 = vpop.permute.xlu0 %41
  %v43 = vmul.f32 %v42, %v37
  %44 = vrot.lane.b32.xlu0 %v33, 4
  %v45 = vpop.permute.xlu0 %44
  %v46 = vmul.f32 %v45, %v37
  %47 = vrot.lane.b32.xlu0 %v29, 1
  %v48 = vpop.permute.xlu0 %47
  %v49 = vmul.f32 %v48, %v39
  %50 = vrot.lane.b32.xlu0 %v33, 1
  %v51 = vpop.permute.xlu0 %50
  %v52 = vmul.f32 %v51, %v39
  %v53 = vld [vmem:[%s0] sm:$0xff]
  %v54 = vld [vmem:[%s0 + $0x8] sm:$0xf]
  %vm55 = vcmask 588800
  %v57 = vsel %vm55, %v53, 0
  %v60 = vsel %vm55, %v54, 0
  %62 = vmatpush.msra.mxu0 0.0
  %63 = vmatpush.msra.mxu0 0.0
  %64 = vmatpush.msra.mxu0 0.0
  %65 = vmatpush.msra.mxu0 0.0
  %66 = vmatpush.msra.mxu0 0.0
  %67 = vmatpush.msra.mxu0 0.0
  %68 = vmatpush.msra.mxu0 0.0
  %69 = vmatpush.msra.mxu0 %v33
  %70 = vmatpush.msra.mxu0 %v31
  %71 = vmatpush.msra.mxu0 %v52
  %72 = vmatpush.msra.mxu0 %v29
  %73 = vmatpush.msra.mxu0 %v27
  %74 = vmatpush.msra.mxu0 %v49
  %75 = vmatpush.msra.mxu0 %v46
  %76 = vmatpush.msra.mxu0 %v43
  %77 = vmatpush.msra.mxu0 %v40
  %78 = vmatmul.f32.gmra.mxu0 %v57
  %v79 = vpop.f32.mrf.mxu0
  %v80 = vadd.f32 0.0, %v79
  %81 = vmatmul.f32.gmra.mxu0 %v60
  %v82 = vpop.f32.mrf.mxu0
  %v83 = vadd.f32 0.0, %v82
  %84 = vdwg.mxu0
  %85 = vrot.lane.b32.xlu0 %v31, 3
  %v86 = vpop.permute.xlu0 %85
  %v87 = vmul.f32 %v86, %v37
  %v88 = vperm.slane %v34, 3
  %v89 = vmul.f32 %v87, %v88
  %90 = vrot.lane.b32.xlu0 %v27, 127
  %v91 = vpop.permute.xlu0 %90
  %v92 = vmul.f32 %v91, %v88
  %93 = vrot.lane.b32.xlu0 %v31, 127
  %v94 = vpop.permute.xlu0 %93
  %v95 = vmul.f32 %v94, %v88
  %96 = vmatpush.msra.mxu0 0.0
  %97 = vmatpush.msra.mxu0 0.0
  %98 = vmatpush.msra.mxu0 0.0
  %99 = vmatpush.msra.mxu0 0.0
  %100 = vmatpush.msra.mxu0 0.0
  %101 = vmatpush.msra.mxu0 0.0
  %102 = vmatpush.msra.mxu0 0.0
  %103 = vmatpush.msra.mxu0 %v95
  %104 = vmatpush.msra.mxu0 %v33
  %105 = vmatpush.msra.mxu0 %v31
  %106 = vmatpush.msra.mxu0 %v92
  %107 = vmatpush.msra.mxu0 %v29
  %108 = vmatpush.msra.mxu0 %v27
  %109 = vmatpush.msra.mxu0 %v89
  %110 = vmatpush.msra.mxu0 %v46
  %111 = vmatpush.msra.mxu0 %v43
  %112 = vmatmul.f32.gmra.mxu0 %v57
  %v113 = vpop.f32.mrf.mxu0
  %v114 = vadd.f32 0.0, %v113
  %115 = vmatmul.f32.gmra.mxu0 %v60
  %v116 = vpop.f32.mrf.mxu0
  %v117 = vadd.f32 0.0, %v116
  %118 = vdwg.mxu0
  %v119 = vmax.f32 %v80, %v114
  %v120 = vmax.f32 %v83, %v117
  %121 = vrot.lane.b32.xlu0 %v29, 125
  %v122 = vpop.permute.xlu0 %121
  %v123 = vperm.slane %v34, 1
  %v124 = vmul.f32 %v122, %v123
  %v125 = vmul.f32 %v124, %v39
  %126 = vrot.lane.b32.xlu0 %v27, 124
  %v127 = vpop.permute.xlu0 %126
  %v128 = vmul.f32 %v127, %v123
  %129 = vrot.lane.b32.xlu0 %v29, 124
  %v130 = vpop.permute.xlu0 %129
  %v131 = vmul.f32 %v130, %v123
  %132 = vmatpush.msra.mxu0 0.0
  %133 = vmatpush.msra.mxu0 0.0
  %134 = vmatpush.msra.mxu0 0.0
  %135 = vmatpush.msra.mxu0 0.0
  %136 = vmatpush.msra.mxu0 0.0
  %137 = vmatpush.msra.mxu0 0.0
  %138 = vmatpush.msra.mxu0 0.0
  %139 = vmatpush.msra.mxu0 %v131
  %140 = vmatpush.msra.mxu0 %v128
  %141 = vmatpush.msra.mxu0 %v125
  %142 = vmatpush.msra.mxu0 %v33
  %143 = vmatpush.msra.mxu0 %v31
  %144 = vmatpush.msra.mxu0 %v52
  %145 = vmatpush.msra.mxu0 %v29
  %146 = vmatpush.msra.mxu0 %v27
  %147 = vmatpush.msra.mxu0 %v49
  %148 = vmatmul.f32.gmra.mxu0 %v57
  %v149 = vpop.f32.mrf.mxu0
  %v150 = vadd.f32 0.0, %v149
  %151 = vmatmul.f32.gmra.mxu0 %v60
  %v152 = vpop.f32.mrf.mxu0
  %v153 = vadd.f32 0.0, %v152
  %154 = vdwg.mxu0
  %v155 = vmax.f32 %v119, %v150
  %v156 = vmax.f32 %v120, %v153
  %157 = vrot.lane.b32.xlu0 %v27, 123
  %v158 = vpop.permute.xlu0 %157
  %v159 = vmul.f32 %v158, %v123
  %v160 = vmul.f32 %v159, %v88
  %161 = vmatpush.msra.mxu0 0.0
  %162 = vmatpush.msra.mxu0 0.0
  %163 = vmatpush.msra.mxu0 0.0
  %164 = vmatpush.msra.mxu0 0.0
  %165 = vmatpush.msra.mxu0 0.0
  %166 = vmatpush.msra.mxu0 0.0
  %167 = vmatpush.msra.mxu0 0.0
  %168 = vmatpush.msra.mxu0 %v160
  %169 = vmatpush.msra.mxu0 %v131
  %170 = vmatpush.msra.mxu0 %v128
  %171 = vmatpush.msra.mxu0 %v95
  %172 = vmatpush.msra.mxu0 %v33
  %173 = vmatpush.msra.mxu0 %v31
  %174 = vmatpush.msra.mxu0 %v92
  %175 = vmatpush.msra.mxu0 %v29
  %176 = vmatpush.msra.mxu0 %v27
  %177 = vmatmul.f32.gmra.mxu0 %v57
  %v178 = vpop.f32.mrf.mxu0
  %v179 = vadd.f32 0.0, %v178
  %180 = vmatmul.f32.gmra.mxu0 %v60
  %v181 = vpop.f32.mrf.mxu0
  %v182 = vadd.f32 0.0, %v181
  %183 = vdwg.mxu0
  %v184 = vmax.f32 %v155, %v179
  %v185 = vmax.f32 %v156, %v182
  %v186 = vld [vmem:[%s1] sm:$0xff]
  %v187 = vld [vmem:[%s1 + $0x8] sm:$0xf]
  %189 = vset.pattern.permute.xlu0 0
  %190 = vperm.xlu0 %189, %v186
  %v191 = vpop.permute.xlu0 %190
  %194 = vset.pattern.permute.xlu0 0
  %195 = vperm.xlu0 %194, %v187
  %v196 = vpop.permute.xlu0 %195
  %v198 = vadd.f32 %v184, %v191
  %v199 = vadd.f32 %v185, %v196
  %v200 = vmax.f32 %v198, 0.0
  %v201 = vmax.f32 %v199, 0.0
  %v202 = vpack.c.bf16 %v200, %v200
  %v203 = vpack.c.bf16 %v201, %v201
  %204 = vst [vmem:[%s7] sm:$0xf] %v202
  %205 = vst [vmem:[%s7 + $0x4] sm:$0x3] %v203
  // Predicated region
  $region30: #{_lambda_.6} parent=0 // pred_check
    _
  $region31: #{_lambda_.6} parent=0 // pred_check_branch
    %207 = sbr.rel (0) target = $region33
  $region32: #{_lambda_.6} parent=0 // pred_region
    _
  $region33: #{_lambda_.6} parent=0 // pred_fallthru
    _
  // Predicated region
  $region34: #{_lambda_.6} parent=0 // pred_check
    _
  $region35: #{_lambda_.6} parent=0 // pred_check_branch
    %209 = sbr.rel (0) target = $region37
  $region36: #{_lambda_.6} parent=0 // pred_region
    _
  $region37: #{_lambda_.6} parent=0 // pred_fallthru
    _

// kernel: _lambda_.5
$region0: #{_lambda_.5}
  #allocation0 [shape = 'u32[]', space=smem, size = 0x4, offset = 0x4, fixed_abs, tag = 'smem constant byte address 0x4 - core index']
  #allocation1 [shape = 'u32[72,128]{1,0:T(1,128)}', space=vmem, size = 0x9000, scoped, tag = 'internal scratch']
  %s0 = inlined_call_operand.vmem [shape: f32[8,9], index: 0, kind: input, shape index: {}]
  %s1 = inlined_call_operand.vmem [shape: f32[8,1], index: 1, kind: input, shape index: {}]
  %s2 = inlined_call_operand.vmem [shape: f32[4,128], index: 2, kind: input, shape index: {}]
  %s3 = inlined_call_operand.vmem [shape: bf16[1,128], index: 3, kind: input, shape index: {}]
  %s4 = inlined_call_operand.vmem [shape: bf16[1,128], index: 4, kind: input, shape index: {}]
  %s5 = inlined_call_operand.vmem [shape: bf16[1,128], index: 5, kind: input, shape index: {}]
  %s6 = inlined_call_operand.vmem [shape: bf16[1,128], index: 6, kind: input, shape index: {}]
  %s7 = inlined_call_operand.vmem [shape: bf16[8,128], index: 7, kind: output, shape index: {}]
  %s8 = sld [smem:[#allocation0]]
  $region38: #{_lambda_.5} parent=0
    _
  %s10 = ssub.s32 1, %s8
  %s11 = scalar_select 0, %s10, %s8
  // Predicated region
  $region2: #{_lambda_.5} parent=0 // pred_check
    _
  $region3: #{_lambda_.5} parent=0 // pred_check_branch
    %13 = sbr.rel (0) target = $region5
  $region4: #{_lambda_.5} parent=0 // pred_region
    _
  $region5: #{_lambda_.5} parent=0 // pred_fallthru
    _
  // Predicated region
  $region6: #{_lambda_.5} parent=0 // pred_check
    _
  $region7: #{_lambda_.5} parent=0 // pred_check_branch
    %15 = sbr.rel (0) target = $region9
  $region8: #{_lambda_.5} parent=0 // pred_region
    _
  $region9: #{_lambda_.5} parent=0 // pred_fallthru
    _
  // Predicated region
  $region10: #{_lambda_.5} parent=0 // pred_check
    _
  $region11: #{_lambda_.5} parent=0 // pred_check_branch
    %17 = sbr.rel (0) target = $region13
  $region12: #{_lambda_.5} parent=0 // pred_region
    _
  $region13: #{_lambda_.5} parent=0 // pred_fallthru
    _
  // Predicated region
  $region14: #{_lambda_.5} parent=0 // pred_check
    _
  $region15: #{_lambda_.5} parent=0 // pred_check_branch
    %19 = sbr.rel (0) target = $region17
  $region16: #{_lambda_.5} parent=0 // pred_region
    _
  $region17: #{_lambda_.5} parent=0 // pred_fallthru
    _
  // Predicated region
  $region18: #{_lambda_.5} parent=0 // pred_check
    _
  $region19: #{_lambda_.5} parent=0 // pred_check_branch
    %21 = sbr.rel (0) target = $region21
  $region20: #{_lambda_.5} parent=0 // pred_region
    _
  $region21: #{_lambda_.5} parent=0 // pred_fallthru
    _
  // Predicated region
  $region22: #{_lambda_.5} parent=0 // pred_check
    _
  $region23: #{_lambda_.5} parent=0 // pred_check_branch
    %23 = sbr.rel (0) target = $region25
  $region24: #{_lambda_.5} parent=0 // pred_region
    _
  $region25: #{_lambda_.5} parent=0 // pred_fallthru
    _
  // Predicated region
  $region26: #{_lambda_.5} parent=0 // pred_check
    _
  $region27: #{_lambda_.5} parent=0 // pred_check_branch
    %25 = sbr.rel (0) target = $region29
  $region28: #{_lambda_.5} parent=0 // pred_region
    _
  $region29: #{_lambda_.5} parent=0 // pred_fallthru
    _
  %v26 = vld [vmem:[%s3] sm:$0x1]
  %v27 = vunpack.c.l.bf16 %v26
  %v28 = vld [vmem:[%s4] sm:$0x1]
  %v29 = vunpack.c.l.bf16 %v28
  %v30 = vld [vmem:[%s5] sm:$0x1]
  %v31 = vunpack.c.l.bf16 %v30
  %v32 = vld [vmem:[%s6] sm:$0x1]
  %v33 = vunpack.c.l.bf16 %v32
  %v34 = vld [vmem:[%s2] sm:$0xf]
  %35 = vrot.lane.b32.xlu0 %v33, 9
  %v36 = vpop.permute.xlu0 %35
  %v37 = vmul.f32 %v36, %v34
  %v39 = vrot.slane %v34, 2
  %v41 = vmul.f32 %v37, %v39
  %42 = vrot.lane.b32.xlu0 %v31, 8
  %v43 = vpop.permute.xlu0 %42
  %v44 = vmul.f32 %v43, %v34
  %45 = vrot.lane.b32.xlu0 %v33, 8
  %v46 = vpop.permute.xlu0 %45
  %v47 = vmul.f32 %v46, %v34
  %48 = vrot.lane.b32.xlu0 %v29, 1
  %v49 = vpop.permute.xlu0 %48
  %v50 = vmul.f32 %v49, %v39
  %51 = vrot.lane.b32.xlu0 %v33, 1
  %v52 = vpop.permute.xlu0 %51
  %v53 = vmul.f32 %v52, %v39
  %v55 = vrot.slane %v44, 7
  %v58 = vrot.slane %v47, 6
  %v61 = vrot.slane %v50, 5
  %v64 = vperm.slane %v27, 0
  %v67 = vperm.slane %v29, 0
  %v70 = vrot.slane %v53, 2
  %v73 = vperm.slane %v31, 0
  %vm75 = vcmask 1040384
  %v76 = vsel %vm75, %v41, %v55
  %vm77 = vcmask 1041408
  %v78 = vsel %vm77, %v76, %v58
  %vm79 = vcmask 1042432
  %v80 = vsel %vm79, %v78, %v61
  %vm81 = vcmask 1043456
  %v82 = vsel %vm81, %v80, %v64
  %vm83 = vcmask 1044480
  %v84 = vsel %vm83, %v82, %v67
  %vm85 = vcmask 1045504
  %v86 = vsel %vm85, %v84, %v70
  %vm87 = vcmask 1046528
  %v88 = vsel %vm87, %v86, %v73
  %v89 = vld [vmem:[%s0] sm:$0xff]
  %vm90 = vcmask 72704
  %v92 = vsel %vm90, %v89, 0
  %v95 = vsel %vm75, %v33, 0
  %97 = vmatpush.msra.mxu0 0.0
  %98 = vmatpush.msra.mxu0 0.0
  %99 = vmatpush.msra.mxu0 0.0
  %100 = vmatpush.msra.mxu0 0.0
  %101 = vmatpush.msra.mxu0 0.0
  %102 = vmatpush.msra.mxu0 0.0
  %103 = vmatpush.msra.mxu0 0.0
  %104 = vmatpush.msra.mxu0 0.0
  %105 = vmatpush.msra.mxu0 0.0
  %106 = vmatpush.msra.mxu0 0.0
  %107 = vmatpush.msra.mxu0 0.0
  %108 = vmatpush.msra.mxu0 0.0
  %109 = vmatpush.msra.mxu0 0.0
  %110 = vmatpush.msra.mxu0 0.0
  %111 = vmatpush.msra.mxu0 %v95
  %112 = vmatpush.msra.mxu0 %v88
  %113 = vmatmul.f32.gmra.mxu0 %v92
  %v114 = vpop.f32.mrf.mxu0
  %v115 = vadd.f32 0.0, %v114
  %116 = vdwg.mxu0
  %117 = vrot.lane.b32.xlu0 %v31, 7
  %v118 = vpop.permute.xlu0 %117
  %v119 = vmul.f32 %v118, %v34
  %v120 = vrot.slane %v34, 3
  %v122 = vmul.f32 %v119, %v120
  %123 = vrot.lane.b32.xlu0 %v27, 127
  %v124 = vpop.permute.xlu0 %123
  %v125 = vmul.f32 %v124, %v120
  %126 = vrot.lane.b32.xlu0 %v31, 127
  %v127 = vpop.permute.xlu0 %126
  %v128 = vmul.f32 %v127, %v120
  %v129 = vrot.slane %v47, 7
  %v132 = vrot.slane %v122, 6
  %v135 = vrot.slane %v125, 3
  %v137 = vperm.slane %v33, 0
  %v139 = vsel %vm75, %v44, %v129
  %v140 = vsel %vm77, %v139, %v132
  %v141 = vsel %vm79, %v140, %v64
  %v142 = vsel %vm81, %v141, %v67
  %v143 = vsel %vm83, %v142, %v135
  %v144 = vsel %vm85, %v143, %v73
  %v145 = vsel %vm87, %v144, %v137
  %v147 = vsel %vm75, %v128, 0
  %149 = vmatpush.msra.mxu0 0.0
  %150 = vmatpush.msra.mxu0 0.0
  %151 = vmatpush.msra.mxu0 0.0
  %152 = vmatpush.msra.mxu0 0.0
  %153 = vmatpush.msra.mxu0 0.0
  %154 = vmatpush.msra.mxu0 0.0
  %155 = vmatpush.msra.mxu0 0.0
  %156 = vmatpush.msra.mxu0 0.0
  %157 = vmatpush.msra.mxu0 0.0
  %158 = vmatpush.msra.mxu0 0.0
  %159 = vmatpush.msra.mxu0 0.0
  %160 = vmatpush.msra.mxu0 0.0
  %161 = vmatpush.msra.mxu0 0.0
  %162 = vmatpush.msra.mxu0 0.0
  %163 = vmatpush.msra.mxu0 %v147
  %164 = vmatpush.msra.mxu0 %v145
  %165 = vmatmul.f32.gmra.mxu0 %v92
  %v166 = vpop.f32.mrf.mxu0
  %v167 = vadd.f32 0.0, %v166
  %168 = vdwg.mxu0
  %v169 = vmax.f32 %v115, %v167
  %170 = vrot.lane.b32.xlu0 %v29, 121
  %v171 = vpop.permute.xlu0 %170
  %v172 = vrot.slane %v34, 1
  %v174 = vmul.f32 %v171, %v172
  %v175 = vmul.f32 %v174, %v39
  %176 = vrot.lane.b32.xlu0 %v27, 120
  %v177 = vpop.permute.xlu0 %176
  %v178 = vmul.f32 %v177, %v172
  %179 = vrot.lane.b32.xlu0 %v29, 120
  %v180 = vpop.permute.xlu0 %179
  %v181 = vmul.f32 %v180, %v172
  %v182 = vrot.slane %v53, 5
  %v185 = vrot.slane %v175, 2
  %v188 = vrot.slane %v178, 1
  %v190 = vsel %vm75, %v50, %v64
  %v191 = vsel %vm77, %v190, %v67
  %v192 = vsel %vm79, %v191, %v182
  %v193 = vsel %vm81, %v192, %v73
  %v194 = vsel %vm83, %v193, %v137
  %v195 = vsel %vm85, %v194, %v185
  %v196 = vsel %vm87, %v195, %v188
  %v198 = vsel %vm75, %v181, 0
  %200 = vmatpush.msra.mxu0 0.0
  %201 = vmatpush.msra.mxu0 0.0
  %202 = vmatpush.msra.mxu0 0.0
  %203 = vmatpush.msra.mxu0 0.0
  %204 = vmatpush.msra.mxu0 0.0
  %205 = vmatpush.msra.mxu0 0.0
  %206 = vmatpush.msra.mxu0 0.0
  %207 = vmatpush.msra.mxu0 0.0
  %208 = vmatpush.msra.mxu0 0.0
  %209 = vmatpush.msra.mxu0 0.0
  %210 = vmatpush.msra.mxu0 0.0
  %211 = vmatpush.msra.mxu0 0.0
  %212 = vmatpush.msra.mxu0 0.0
  %213 = vmatpush.msra.mxu0 0.0
  %214 = vmatpush.msra.mxu0 %v198
  %215 = vmatpush.msra.mxu0 %v196
  %216 = vmatmul.f32.gmra.mxu0 %v92
  %v217 = vpop.f32.mrf.mxu0
  %v218 = vadd.f32 0.0, %v217
  %219 = vdwg.mxu0
  %v220 = vmax.f32 %v169, %v218
  %221 = vrot.lane.b32.xlu0 %v27, 119
  %v222 = vpop.permute.xlu0 %221
  %v223 = vmul.f32 %v222, %v172
  %v224 = vmul.f32 %v223, %v120
  %v225 = vrot.slane %v125, 6
  %v227 = vrot.slane %v128, 3
  %v229 = vrot.slane %v178, 2
  %v231 = vrot.slane %v181, 1
  %v233 = vsel %vm75, %v27, %v67
  %v234 = vsel %vm77, %v233, %v225
  %v235 = vsel %vm79, %v234, %v73
  %v236 = vsel %vm81, %v235, %v137
  %v237 = vsel %vm83, %v236, %v227
  %v238 = vsel %vm85, %v237, %v229
  %v239 = vsel %vm87, %v238, %v231
  %v241 = vsel %vm75, %v224, 0
  %243 = vmatpush.msra.mxu0 0.0
  %244 = vmatpush.msra.mxu0 0.0
  %245 = vmatpush.msra.mxu0 0.0
  %246 = vmatpush.msra.mxu0 0.0
  %247 = vmatpush.msra.mxu0 0.0
  %248 = vmatpush.msra.mxu0 0.0
  %249 = vmatpush.msra.mxu0 0.0
  %250 = vmatpush.msra.mxu0 0.0
  %251 = vmatpush.msra.mxu0 0.0
  %252 = vmatpush.msra.mxu0 0.0
  %253 = vmatpush.msra.mxu0 0.0
  %254 = vmatpush.msra.mxu0 0.0
  %255 = vmatpush.msra.mxu0 0.0
  %256 = vmatpush.msra.mxu0 0.0
  %257 = vmatpush.msra.mxu0 %v241
  %258 = vmatpush.msra.mxu0 %v239
  %259 = vmatmul.f32.gmra.mxu0 %v92
  %v260 = vpop.f32.mrf.mxu0
  %v261 = vadd.f32 0.0, %v260
  %262 = vdwg.mxu0
  %v263 = vmax.f32 %v220, %v261
  %v264 = vld [vmem:[%s1] sm:$0xff]
  %266 = vset.pattern.permute.xlu0 0
  %267 = vperm.xlu0 %266, %v264
  %v268 = vpop.permute.xlu0 %267
  %v270 = vadd.f32 %v263, %v268
  %v271 = vmax.f32 %v270, 0.0
  %v272 = vpack.c.bf16 %v271, %v271
  %273 = vst [vmem:[%s7] sm:$0xf] %v272
  // Predicated region
  $region30: #{_lambda_.5} parent=0 // pred_check
    _
  $region31: #{_lambda_.5} parent=0 // pred_check_branch
    %275 = sbr.rel (0) target = $region33
  $region32: #{_lambda_.5} parent=0 // pred_region
    _
  $region33: #{_lambda_.5} parent=0 // pred_fallthru
    _
  // Predicated region
  $region34: #{_lambda_.5} parent=0 // pred_check
    _
  $region35: #{_lambda_.5} parent=0 // pred_check_branch
    %277 = sbr.rel (0) target = $region37
  $region36: #{_lambda_.5} parent=0 // pred_region
    _
  $region37: #{_lambda_.5} parent=0 // pred_fallthru
    _

// kernel: _lambda_.7
$region0: #{_lambda_.7}
  #allocation0 [shape = 'u32[]', space=smem, size = 0x4, offset = 0x4, fixed_abs, tag = 'smem constant byte address 0x4 - core index']
  #allocation1 [shape = 'u32[72,128]{1,0:T(1,128)}', space=vmem, size = 0x9000, scoped, tag = 'internal scratch']
  %s0 = inlined_call_operand.vmem [shape: f32[16,108], index: 0, kind: input, shape index: {}]
  %s1 = inlined_call_operand.vmem [shape: f32[16,1], index: 1, kind: input, shape index: {}]
  %s2 = inlined_call_operand.vmem [shape: f32[4,128], index: 2, kind: input, shape index: {}]
  %s3 = inlined_call_operand.vmem [shape: bf16[12,128], index: 3, kind: input, shape index: {}]
  %s4 = inlined_call_operand.vmem [shape: bf16[16,128], index: 4, kind: output, shape index: {}]
  %s5 = sld [smem:[#allocation0]]
  $region26: #{_lambda_.7} parent=0
    _
  %s7 = ssub.s32 1, %s5
  %s8 = scalar_select 0, %s7, %s5
  // Predicated region
  $region2: #{_lambda_.7} parent=0 // pred_check
    _
  $region3: #{_lambda_.7} parent=0 // pred_check_branch
    %10 = sbr.rel (0) target = $region5
  $region4: #{_lambda_.7} parent=0 // pred_region
    _
  $region5: #{_lambda_.7} parent=0 // pred_fallthru
    _
  // Predicated region
  $region6: #{_lambda_.7} parent=0 // pred_check
    _
  $region7: #{_lambda_.7} parent=0 // pred_check_branch
    %12 = sbr.rel (0) target = $region9
  $region8: #{_lambda_.7} parent=0 // pred_region
    _
  $region9: #{_lambda_.7} parent=0 // pred_fallthru
    _
  // Predicated region
  $region10: #{_lambda_.7} parent=0 // pred_check
    _
  $region11: #{_lambda_.7} parent=0 // pred_check_branch
    %14 = sbr.rel (0) target = $region13
  $region12: #{_lambda_.7} parent=0 // pred_region
    _
  $region13: #{_lambda_.7} parent=0 // pred_fallthru
    _
  // Predicated region
  $region14: #{_lambda_.7} parent=0 // pred_check
    _
  $region15: #{_lambda_.7} parent=0 // pred_check_branch
    %16 = sbr.rel (0) target = $region17
  $region16: #{_lambda_.7} parent=0 // pred_region
    _
  $region17: #{_lambda_.7} parent=0 // pred_fallthru
    _
  %v17 = vld [vmem:[%s3] sm:$0xf]
  %v18 = vld [vmem:[%s3 + $0x4] sm:$0x3]
  %v19 = vunpack.c.l.bf16 %v17
  %v20 = vunpack.c.l.bf16 %v18
  %v21 = vld [vmem:[%s2] sm:$0xf]
  %22 = vrot.lane.b32.xlu0 %v19, 5
  %v23 = vpop.permute.xlu0 %22
  %24 = vrot.lane.b32.xlu0 %v20, 5
  %v25 = vpop.permute.xlu0 %24
  %v26 = vperm.slane %v21, 0
  %v27 = vmul.f32 %v23, %v26
  %v28 = vmul.f32 %v25, %v26
  %v29 = vperm.slane %v21, 2
  %v30 = vmul.f32 %v27, %v29
  %v31 = vmul.f32 %v28, %v29
  %32 = vrot.lane.b32.xlu0 %v19, 4
  %v33 = vpop.permute.xlu0 %32
  %34 = vrot.lane.b32.xlu0 %v20, 4
  %v35 = vpop.permute.xlu0 %34
  %v36 = vmul.f32 %v33, %v26
  %v37 = vmul.f32 %v35, %v26
  %38 = vrot.lane.b32.xlu0 %v19, 3
  %v39 = vpop.permute.xlu0 %38
  %40 = vrot.lane.b32.xlu0 %v20, 3
  %v41 = vpop.permute.xlu0 %40
  %v42 = vmul.f32 %v39, %v26
  %v43 = vmul.f32 %v41, %v26
  %v44 = vperm.slane %v21, 3
  %v45 = vmul.f32 %v42, %v44
  %v46 = vmul.f32 %v43, %v44
  %47 = vrot.lane.b32.xlu0 %v19, 1
  %v48 = vpop.permute.xlu0 %47
  %49 = vrot.lane.b32.xlu0 %v20, 1
  %v50 = vpop.permute.xlu0 %49
  %v51 = vmul.f32 %v48, %v29
  %v52 = vmul.f32 %v50, %v29
  %53 = vrot.lane.b32.xlu0 %v19, 127
  %v54 = vpop.permute.xlu0 %53
  %55 = vrot.lane.b32.xlu0 %v20, 127
  %v56 = vpop.permute.xlu0 %55
  %v57 = vmul.f32 %v54, %v44
  %v58 = vmul.f32 %v56, %v44
  %59 = vrot.lane.b32.xlu0 %v19, 125
  %v60 = vpop.permute.xlu0 %59
  %61 = vrot.lane.b32.xlu0 %v20, 125
  %v62 = vpop.permute.xlu0 %61
  %v63 = vperm.slane %v21, 1
  %v64 = vmul.f32 %v60, %v63
  %v65 = vmul.f32 %v62, %v63
  %v66 = vmul.f32 %v64, %v29
  %v67 = vmul.f32 %v65, %v29
  %68 = vrot.lane.b32.xlu0 %v19, 124
  %v69 = vpop.permute.xlu0 %68
  %70 = vrot.lane.b32.xlu0 %v20, 124
  %v71 = vpop.permute.xlu0 %70
  %v72 = vmul.f32 %v69, %v63
  %v73 = vmul.f32 %v71, %v63
  %74 = vrot.lane.b32.xlu0 %v19, 123
  %v75 = vpop.permute.xlu0 %74
  %76 = vrot.lane.b32.xlu0 %v20, 123
  %v77 = vpop.permute.xlu0 %76
  %v78 = vmul.f32 %v75, %v63
  %v79 = vmul.f32 %v77, %v63
  %v80 = vmul.f32 %v78, %v44
  %v81 = vmul.f32 %v79, %v44
  %vm84 = vcmask 1043456
  %v85 = vrot.slane %v36, 4
  %v86 = vrot.slane %v37, 4
  %v87 = vsel %vm84, %v85, %v86
  %v92 = vrot.slane %v51, 4
  %v93 = vrot.slane %v52, 4
  %v94 = vsel %vm84, %v92, %v93
  %v99 = vrot.slane %v57, 4
  %v100 = vrot.slane %v58, 4
  %v101 = vsel %vm84, %v99, %v100
  %v106 = vrot.slane %v72, 4
  %v107 = vrot.slane %v73, 4
  %v108 = vsel %vm84, %v106, %v107
  %v111 = vsel %vm84, %v31, %v85
  %v112 = vsel %vm84, %v46, %v92
  %v113 = vsel %vm84, %v20, %v99
  %v114 = vsel %vm84, %v67, %v106
  %v115 = vld [vmem:[%s0] sm:$0xff]
  %v116 = vld [vmem:[%s0 + $0x8] sm:$0xff]
  %v117 = vld [vmem:[%s1] sm:$0xff]
  %v118 = vld [vmem:[%s1 + $0x8] sm:$0xff]
  %120 = vset.pattern.permute.xlu0 0
  %121 = vperm.xlu0 %120, %v117
  %v122 = vpop.permute.xlu0 %121
  %125 = vset.pattern.permute.xlu0 0
  %126 = vperm.xlu0 %125, %v118
  %v127 = vpop.permute.xlu0 %126
  %vm129 = vcmask 883712
  %v131 = vsel %vm129, %v115, 0
  %v134 = vsel %vm129, %v116, 0
  %v137 = vsel %vm84, %v81, 0
  %139 = vmatpush.msra.mxu0 0.0
  %140 = vmatpush.msra.mxu0 0.0
  %141 = vmatpush.msra.mxu0 %v137
  %142 = vmatpush.msra.mxu0 %v80
  %143 = vmatpush.msra.mxu0 %v108
  %144 = vmatpush.msra.mxu0 %v114
  %145 = vmatpush.msra.mxu0 %v66
  %146 = vmatpush.msra.mxu0 %v101
  %147 = vmatpush.msra.mxu0 %v113
  %148 = vmatpush.msra.mxu0 %v19
  %149 = vmatpush.msra.mxu0 %v94
  %150 = vmatpush.msra.mxu0 %v112
  %151 = vmatpush.msra.mxu0 %v45
  %152 = vmatpush.msra.mxu0 %v87
  %153 = vmatpush.msra.mxu0 %v111
  %154 = vmatpush.msra.mxu0 %v30
  %155 = vmatmul.f32.gmra.mxu0 %v131
  %v156 = vpop.f32.mrf.mxu0
  %v157 = vadd.f32 %v122, %v156
  %158 = vmatmul.f32.gmra.mxu0 %v134
  %v159 = vpop.f32.mrf.mxu0
  %v160 = vadd.f32 %v127, %v159
  %161 = vdwg.mxu0
  %v162 = vmax.f32 %v157, 0.0
  %v163 = vmax.f32 %v160, 0.0
  %v164 = vpack.c.bf16 %v162, %v162
  %v165 = vpack.c.bf16 %v163, %v163
  %166 = vst [vmem:[%s4] sm:$0xf] %v164
  %167 = vst [vmem:[%s4 + $0x4] sm:$0xf] %v165
  // Predicated region
  $region18: #{_lambda_.7} parent=0 // pred_check
    _
  $region19: #{_lambda_.7} parent=0 // pred_check_branch
    %169 = sbr.rel (0) target = $region21
  $region20: #{_lambda_.7} parent=0 // pred_region
    _
  $region21: #{_lambda_.7} parent=0 // pred_fallthru
    _
  // Predicated region
  $region22: #{_lambda_.7} parent=0 // pred_check
    _
  $region23: #{_lambda_.7} parent=0 // pred_check_branch
    %171 = sbr.rel (0) target = $region25
  $region24: #{_lambda_.7} parent=0 // pred_region
    _
  $region25: #{_lambda_.7} parent=0 // pred_fallthru
    _

// kernel: _lambda_.8
$region0: #{_lambda_.8}
  #allocation0 [shape = 'u32[]', space=smem, size = 0x4, offset = 0x4, fixed_abs, tag = 'smem constant byte address 0x4 - core index']
  #allocation1 [shape = 'u32[72,128]{1,0:T(1,128)}', space=vmem, size = 0x9000, scoped, tag = 'internal scratch']
  %s0 = inlined_call_operand.vmem [shape: f32[12,144], index: 0, kind: input, shape index: {}]
  %s1 = inlined_call_operand.vmem [shape: f32[12,1], index: 1, kind: input, shape index: {}]
  %s2 = inlined_call_operand.vmem [shape: f32[4,128], index: 2, kind: input, shape index: {}]
  %s3 = inlined_call_operand.vmem [shape: bf16[16,128], index: 3, kind: input, shape index: {}]
  %s4 = inlined_call_operand.vmem [shape: bf16[4,12,128], index: 4, kind: output, shape index: {}]
  %s5 = sld [smem:[#allocation0]]
  $region26: #{_lambda_.8} parent=0
    _
  %s7 = ssub.s32 1, %s5
  %s8 = scalar_select 0, %s7, %s5
  // Predicated region
  $region2: #{_lambda_.8} parent=0 // pred_check
    _
  $region3: #{_lambda_.8} parent=0 // pred_check_branch
    %10 = sbr.rel (0) target = $region5
  $region4: #{_lambda_.8} parent=0 // pred_region
    _
  $region5: #{_lambda_.8} parent=0 // pred_fallthru
    _
  // Predicated region
  $region6: #{_lambda_.8} parent=0 // pred_check
    _
  $region7: #{_lambda_.8} parent=0 // pred_check_branch
    %12 = sbr.rel (0) target = $region9
  $region8: #{_lambda_.8} parent=0 // pred_region
    _
  $region9: #{_lambda_.8} parent=0 // pred_fallthru
    _
  // Predicated region
  $region10: #{_lambda_.8} parent=0 // pred_check
    _
  $region11: #{_lambda_.8} parent=0 // pred_check_branch
    %14 = sbr.rel (0) target = $region13
  $region12: #{_lambda_.8} parent=0 // pred_region
    _
  $region13: #{_lambda_.8} parent=0 // pred_fallthru
    _
  // Predicated region
  $region14: #{_lambda_.8} parent=0 // pred_check
    _
  $region15: #{_lambda_.8} parent=0 // pred_check_branch
    %16 = sbr.rel (0) target = $region17
  $region16: #{_lambda_.8} parent=0 // pred_region
    _
  $region17: #{_lambda_.8} parent=0 // pred_fallthru
    _
  %v17 = vld [vmem:[%s3] sm:$0xf]
  %v18 = vld [vmem:[%s3 + $0x4] sm:$0xf]
  %v19 = vunpack.c.l.bf16 %v17
  %v20 = vunpack.c.l.bf16 %v18
  %v21 = vld [vmem:[%s2] sm:$0xf]
  %22 = vrot.lane.b32.xlu0 %v19, 5
  %v23 = vpop.permute.xlu0 %22
  %24 = vrot.lane.b32.xlu0 %v20, 5
  %v25 = vpop.permute.xlu0 %24
  %v26 = vperm.slane %v21, 0
  %v27 = vmul.f32 %v23, %v26
  %v28 = vmul.f32 %v25, %v26
  %v29 = vperm.slane %v21, 2
  %v30 = vmul.f32 %v27, %v29
  %v31 = vmul.f32 %v28, %v29
  %32 = vrot.lane.b32.xlu0 %v19, 4
  %v33 = vpop.permute.xlu0 %32
  %34 = vrot.lane.b32.xlu0 %v20, 4
  %v35 = vpop.permute.xlu0 %34
  %v36 = vmul.f32 %v33, %v26
  %v37 = vmul.f32 %v35, %v26
  %38 = vrot.lane.b32.xlu0 %v19, 1
  %v39 = vpop.permute.xlu0 %38
  %40 = vrot.lane.b32.xlu0 %v20, 1
  %v41 = vpop.permute.xlu0 %40
  %v42 = vmul.f32 %v39, %v29
  %v43 = vmul.f32 %v41, %v29
  %v44 = vld [vmem:[%s0] sm:$0xff]
  %v45 = vld [vmem:[%s0 + $0x8] sm:$0xff]
  %v46 = vld [vmem:[%s0 + $0x10] sm:$0xf]
  %v47 = vld [vmem:[%s0 + $0x18] sm:$0xf]
  %v48 = vld [vmem:[%s1] sm:$0xff]
  %v49 = vld [vmem:[%s1 + $0x8] sm:$0xf]
  %51 = vset.pattern.permute.xlu0 0
  %52 = vperm.xlu0 %51, %v48
  %v53 = vpop.permute.xlu0 %52
  %56 = vset.pattern.permute.xlu0 0
  %57 = vperm.xlu0 %56, %v49
  %v58 = vpop.permute.xlu0 %57
  %vm60 = vcmask 130048
  %v62 = vsel %vm60, %v45, 0
  %v65 = vsel %vm60, %v47, 0
  %67 = vmatpush.msra.mxu0 %v20
  %68 = vmatpush.msra.mxu0 %v19
  %69 = vmatpush.msra.mxu0 %v43
  %70 = vmatpush.msra.mxu0 %v42
  %71 = vmatpush.msra.mxu0 %v20
  %72 = vmatpush.msra.mxu0 %v19
  %73 = vmatpush.msra.mxu0 %v20
  %74 = vmatpush.msra.mxu0 %v19
  %75 = vmatpush.msra.mxu0 %v43
  %76 = vmatpush.msra.mxu0 %v42
  %77 = vmatpush.msra.mxu0 %v37
  %78 = vmatpush.msra.mxu0 %v36
  %79 = vmatpush.msra.mxu0 %v37
  %80 = vmatpush.msra.mxu0 %v36
  %81 = vmatpush.msra.mxu0 %v31
  %82 = vmatpush.msra.mxu0 %v30
  %83 = vmatmul.f32.gmra.mxu0 %v44
  %v84 = vpop.f32.mrf.mxu0
  %v85 = vadd.f32 %v53, %v84
  %86 = vmatmul.f32.gmra.mxu0 %v46
  %v87 = vpop.f32.mrf.mxu0
  %v88 = vadd.f32 %v58, %v87
  %89 = vdwg.mxu0
  %90 = vmatpush.msra.mxu0 0.0
  %91 = vmatpush.msra.mxu0 0.0
  %92 = vmatpush.msra.mxu0 0.0
  %93 = vmatpush.msra.mxu0 0.0
  %94 = vmatpush.msra.mxu0 0.0
  %95 = vmatpush.msra.mxu0 0.0
  %96 = vmatpush.msra.mxu0 0.0
  %97 = vmatpush.msra.mxu0 0.0
  %98 = vmatpush.msra.mxu0 0.0
  %99 = vmatpush.msra.mxu0 0.0
  %100 = vmatpush.msra.mxu0 0.0
  %101 = vmatpush.msra.mxu0 0.0
  %102 = vmatpush.msra.mxu0 0.0
  %103 = vmatpush.msra.mxu0 0.0
  %104 = vmatpush.msra.mxu0 %v20
  %105 = vmatpush.msra.mxu0 %v19
  %106 = vmatmul.f32.gmra.mxu0 %v62
  %v107 = vpop.f32.mrf.mxu0
  %v108 = vadd.f32 %v85, %v107
  %109 = vmatmul.f32.gmra.mxu0 %v65
  %v110 = vpop.f32.mrf.mxu0
  %v111 = vadd.f32 %v88, %v110
  %112 = vdwg.mxu0
  %v113 = vmax.f32 %v108, 0.0
  %v114 = vmax.f32 %v111, 0.0
  %v115 = vpack.c.bf16 %v113, %v113
  %v116 = vpack.c.bf16 %v114, %v114
  %117 = vst [vmem:[%s4] sm:$0xf] %v115
  %118 = vst [vmem:[%s4 + $0x4] sm:$0x3] %v116
  %119 = vrot.lane.b32.xlu0 %v19, 3
  %v120 = vpop.permute.xlu0 %119
  %121 = vrot.lane.b32.xlu0 %v20, 3
  %v122 = vpop.permute.xlu0 %121
  %v123 = vmul.f32 %v120, %v26
  %v124 = vmul.f32 %v122, %v26
  %v125 = vperm.slane %v21, 3
  %v126 = vmul.f32 %v123, %v125
  %v127 = vmul.f32 %v124, %v125
  %128 = vrot.lane.b32.xlu0 %v19, 127
  %v129 = vpop.permute.xlu0 %128
  %130 = vrot.lane.b32.xlu0 %v20, 127
  %v131 = vpop.permute.xlu0 %130
  %v132 = vmul.f32 %v129, %v125
  %v133 = vmul.f32 %v131, %v125
  %v134 = vld [vmem:[%s0] sm:$0xff]
  %v135 = vld [vmem:[%s0 + $0x8] sm:$0xff]
  %v136 = vld [vmem:[%s0 + $0x10] sm:$0xf]
  %v137 = vld [vmem:[%s0 + $0x18] sm:$0xf]
  %v138 = vld [vmem:[%s1] sm:$0xff]
  %v139 = vld [vmem:[%s1 + $0x8] sm:$0xf]
  %141 = vset.pattern.permute.xlu0 0
  %142 = vperm.xlu0 %141, %v138
  %v143 = vpop.permute.xlu0 %142
  %146 = vset.pattern.permute.xlu0 0
  %147 = vperm.xlu0 %146, %v139
  %v148 = vpop.permute.xlu0 %147
  %v151 = vsel %vm60, %v135, 0
  %v154 = vsel %vm60, %v137, 0
  %156 = vmatpush.msra.mxu0 %v20
  %157 = vmatpush.msra.mxu0 %v19
  %158 = vmatpush.msra.mxu0 %v20
  %159 = vmatpush.msra.mxu0 %v19
  %160 = vmatpush.msra.mxu0 %v133
  %161 = vmatpush.msra.mxu0 %v132
  %162 = vmatpush.msra.mxu0 %v20
  %163 = vmatpush.msra.mxu0 %v19
  %164 = vmatpush.msra.mxu0 %v20
  %165 = vmatpush.msra.mxu0 %v19
  %166 = vmatpush.msra.mxu0 %v127
  %167 = vmatpush.msra.mxu0 %v126
  %168 = vmatpush.msra.mxu0 %v37
  %169 = vmatpush.msra.mxu0 %v36
  %170 = vmatpush.msra.mxu0 %v37
  %171 = vmatpush.msra.mxu0 %v36
  %172 = vmatmul.f32.gmra.mxu0 %v134
  %v173 = vpop.f32.mrf.mxu0
  %v174 = vadd.f32 %v143, %v173
  %175 = vmatmul.f32.gmra.mxu0 %v136
  %v176 = vpop.f32.mrf.mxu0
  %v177 = vadd.f32 %v148, %v176
  %178 = vdwg.mxu0
  %179 = vmatpush.msra.mxu0 0.0
  %180 = vmatpush.msra.mxu0 0.0
  %181 = vmatpush.msra.mxu0 0.0
  %182 = vmatpush.msra.mxu0 0.0
  %183 = vmatpush.msra.mxu0 0.0
  %184 = vmatpush.msra.mxu0 0.0
  %185 = vmatpush.msra.mxu0 0.0
  %186 = vmatpush.msra.mxu0 0.0
  %187 = vmatpush.msra.mxu0 0.0
  %188 = vmatpush.msra.mxu0 0.0
  %189 = vmatpush.msra.mxu0 0.0
  %190 = vmatpush.msra.mxu0 0.0
  %191 = vmatpush.msra.mxu0 0.0
  %192 = vmatpush.msra.mxu0 0.0
  %193 = vmatpush.msra.mxu0 %v133
  %194 = vmatpush.msra.mxu0 %v132
  %195 = vmatmul.f32.gmra.mxu0 %v151
  %v196 = vpop.f32.mrf.mxu0
  %v197 = vadd.f32 %v174, %v196
  %198 = vmatmul.f32.gmra.mxu0 %v154
  %v199 = vpop.f32.mrf.mxu0
  %v200 = vadd.f32 %v177, %v199
  %201 = vdwg.mxu0
  %v202 = vmax.f32 %v197, 0.0
  %v203 = vmax.f32 %v200, 0.0
  %v204 = vpack.c.bf16 %v202, %v202
  %v205 = vpack.c.bf16 %v203, %v203
  %s206 = scalar_lea.vmem %s4, 8
  %207 = vst [vmem:[%s206] sm:$0xf] %v204
  %208 = vst [vmem:[%s206 + $0x4] sm:$0x3] %v205
  %209 = vrot.lane.b32.xlu0 %v19, 125
  %v210 = vpop.permute.xlu0 %209
  %211 = vrot.lane.b32.xlu0 %v20, 125
  %v212 = vpop.permute.xlu0 %211
  %v213 = vperm.slane %v21, 1
  %v214 = vmul.f32 %v210, %v213
  %v215 = vmul.f32 %v212, %v213
  %v216 = vmul.f32 %v214, %v29
  %v217 = vmul.f32 %v215, %v29
  %218 = vrot.lane.b32.xlu0 %v19, 124
  %v219 = vpop.permute.xlu0 %218
  %220 = vrot.lane.b32.xlu0 %v20, 124
  %v221 = vpop.permute.xlu0 %220
  %v222 = vmul.f32 %v219, %v213
  %v223 = vmul.f32 %v221, %v213
  %v224 = vld [vmem:[%s0] sm:$0xff]
  %v225 = vld [vmem:[%s0 + $0x8] sm:$0xff]
  %v226 = vld [vmem:[%s0 + $0x10] sm:$0xf]
  %v227 = vld [vmem:[%s0 + $0x18] sm:$0xf]
  %v228 = vld [vmem:[%s1] sm:$0xff]
  %v229 = vld [vmem:[%s1 + $0x8] sm:$0xf]
  %231 = vset.pattern.permute.xlu0 0
  %232 = vperm.xlu0 %231, %v228
  %v233 = vpop.permute.xlu0 %232
  %236 = vset.pattern.permute.xlu0 0
  %237 = vperm.xlu0 %236, %v229
  %v238 = vpop.permute.xlu0 %237
  %v241 = vsel %vm60, %v225, 0
  %v244 = vsel %vm60, %v227, 0
  %246 = vmatpush.msra.mxu0 %v223
  %247 = vmatpush.msra.mxu0 %v222
  %248 = vmatpush.msra.mxu0 %v217
  %249 = vmatpush.msra.mxu0 %v216
  %250 = vmatpush.msra.mxu0 %v20
  %251 = vmatpush.msra.mxu0 %v19
  %252 = vmatpush.msra.mxu0 %v20
  %253 = vmatpush.msra.mxu0 %v19
  %254 = vmatpush.msra.mxu0 %v43
  %255 = vmatpush.msra.mxu0 %v42
  %256 = vmatpush.msra.mxu0 %v20
  %257 = vmatpush.msra.mxu0 %v19
  %258 = vmatpush.msra.mxu0 %v20
  %259 = vmatpush.msra.mxu0 %v19
  %260 = vmatpush.msra.mxu0 %v43
  %261 = vmatpush.msra.mxu0 %v42
  %262 = vmatmul.f32.gmra.mxu0 %v224
  %v263 = vpop.f32.mrf.mxu0
  %v264 = vadd.f32 %v233, %v263
  %265 = vmatmul.f32.gmra.mxu0 %v226
  %v266 = vpop.f32.mrf.mxu0
  %v267 = vadd.f32 %v238, %v266
  %268 = vdwg.mxu0
  %269 = vmatpush.msra.mxu0 0.0
  %270 = vmatpush.msra.mxu0 0.0
  %271 = vmatpush.msra.mxu0 0.0
  %272 = vmatpush.msra.mxu0 0.0
  %273 = vmatpush.msra.mxu0 0.0
  %274 = vmatpush.msra.mxu0 0.0
  %275 = vmatpush.msra.mxu0 0.0
  %276 = vmatpush.msra.mxu0 0.0
  %277 = vmatpush.msra.mxu0 0.0
  %278 = vmatpush.msra.mxu0 0.0
  %279 = vmatpush.msra.mxu0 0.0
  %280 = vmatpush.msra.mxu0 0.0
  %281 = vmatpush.msra.mxu0 0.0
  %282 = vmatpush.msra.mxu0 0.0
  %283 = vmatpush.msra.mxu0 %v223
  %284 = vmatpush.msra.mxu0 %v222
  %285 = vmatmul.f32.gmra.mxu0 %v241
  %v286 = vpop.f32.mrf.mxu0
  %v287 = vadd.f32 %v264, %v286
  %288 = vmatmul.f32.gmra.mxu0 %v244
  %v289 = vpop.f32.mrf.mxu0
  %v290 = vadd.f32 %v267, %v289
  %291 = vdwg.mxu0
  %v292 = vmax.f32 %v287, 0.0
  %v293 = vmax.f32 %v290, 0.0
  %v294 = vpack.c.bf16 %v292, %v292
  %v295 = vpack.c.bf16 %v293, %v293
  %s296 = scalar_lea.vmem %s4, 16
  %297 = vst [vmem:[%s296] sm:$0xf] %v294
  %298 = vst [vmem:[%s296 + $0x4] sm:$0x3] %v295
  %299 = vrot.lane.b32.xlu0 %v19, 123
  %v300 = vpop.permute.xlu0 %299
  %301 = vrot.lane.b32.xlu0 %v20, 123
  %v302 = vpop.permute.xlu0 %301
  %v303 = vmul.f32 %v300, %v213
  %v304 = vmul.f32 %v302, %v213
  %v305 = vmul.f32 %v303, %v125
  %v306 = vmul.f32 %v304, %v125
  %v307 = vld [vmem:[%s0] sm:$0xff]
  %v308 = vld [vmem:[%s0 + $0x8] sm:$0xff]
  %v309 = vld [vmem:[%s0 + $0x10] sm:$0xf]
  %v310 = vld [vmem:[%s0 + $0x18] sm:$0xf]
  %v311 = vld [vmem:[%s1] sm:$0xff]
  %v312 = vld [vmem:[%s1 + $0x8] sm:$0xf]
  %314 = vset.pattern.permute.xlu0 0
  %315 = vperm.xlu0 %314, %v311
  %v316 = vpop.permute.xlu0 %315
  %319 = vset.pattern.permute.xlu0 0
  %320 = vperm.xlu0 %319, %v312
  %v321 = vpop.permute.xlu0 %320
  %v324 = vsel %vm60, %v308, 0
  %v327 = vsel %vm60, %v310, 0
  %329 = vmatpush.msra.mxu0 %v223
  %330 = vmatpush.msra.mxu0 %v222
  %331 = vmatpush.msra.mxu0 %v223
  %332 = vmatpush.msra.mxu0 %v222
  %333 = vmatpush.msra.mxu0 %v133
  %334 = vmatpush.msra.mxu0 %v132
  %335 = vmatpush.msra.mxu0 %v20
  %336 = vmatpush.msra.mxu0 %v19
  %337 = vmatpush.msra.mxu0 %v20
  %338 = vmatpush.msra.mxu0 %v19
  %339 = vmatpush.msra.mxu0 %v133
  %340 = vmatpush.msra.mxu0 %v132
  %341 = vmatpush.msra.mxu0 %v20
  %342 = vmatpush.msra.mxu0 %v19
  %343 = vmatpush.msra.mxu0 %v20
  %344 = vmatpush.msra.mxu0 %v19
  %345 = vmatmul.f32.gmra.mxu0 %v307
  %v346 = vpop.f32.mrf.mxu0
  %v347 = vadd.f32 %v316, %v346
  %348 = vmatmul.f32.gmra.mxu0 %v309
  %v349 = vpop.f32.mrf.mxu0
  %v350 = vadd.f32 %v321, %v349
  %351 = vdwg.mxu0
  %352 = vmatpush.msra.mxu0 0.0
  %353 = vmatpush.msra.mxu0 0.0
  %354 = vmatpush.msra.mxu0 0.0
  %355 = vmatpush.msra.mxu0 0.0
  %356 = vmatpush.msra.mxu0 0.0
  %357 = vmatpush.msra.mxu0 0.0
  %358 = vmatpush.msra.mxu0 0.0
  %359 = vmatpush.msra.mxu0 0.0
  %360 = vmatpush.msra.mxu0 0.0
  %361 = vmatpush.msra.mxu0 0.0
  %362 = vmatpush.msra.mxu0 0.0
  %363 = vmatpush.msra.mxu0 0.0
  %364 = vmatpush.msra.mxu0 0.0
  %365 = vmatpush.msra.mxu0 0.0
  %366 = vmatpush.msra.mxu0 %v306
  %367 = vmatpush.msra.mxu0 %v305
  %368 = vmatmul.f32.gmra.mxu0 %v324
  %v369 = vpop.f32.mrf.mxu0
  %v370 = vadd.f32 %v347, %v369
  %371 = vmatmul.f32.gmra.mxu0 %v327
  %v372 = vpop.f32.mrf.mxu0
  %v373 = vadd.f32 %v350, %v372
  %374 = vdwg.mxu0
  %v375 = vmax.f32 %v370, 0.0
  %v376 = vmax.f32 %v373, 0.0
  %v377 = vpack.c.bf16 %v375, %v375
  %v378 = vpack.c.bf16 %v376, %v376
  %s379 = scalar_lea.vmem %s4, 24
  %380 = vst [vmem:[%s379] sm:$0xf] %v377
  %381 = vst [vmem:[%s379 + $0x4] sm:$0x3] %v378
  // Predicated region
  $region18: #{_lambda_.8} parent=0 // pred_check
    _
  $region19: #{_lambda_.8} parent=0 // pred_check_branch
    %383 = sbr.rel (0) target = $region21
  $region20: #{_lambda_.8} parent=0 // pred_region
    _
  $region21: #{_lambda_.8} parent=0 // pred_fallthru
    _
  // Predicated region
  $region22: #{_lambda_.8} parent=0 // pred_check
    _
  $region23: #{_lambda_.8} parent=0 // pred_check_branch
    %385 = sbr.rel (0) target = $region25
  $region24: #{_lambda_.8} parent=0 // pred_region
    _
  $region25: #{_lambda_.8} parent=0 // pred_fallthru
    _

// kernel: _lambda_.9
$region0: #{_lambda_.9}
  #allocation0 [shape = 'u32[]', space=smem, size = 0x4, offset = 0x4, fixed_abs, tag = 'smem constant byte address 0x4 - core index']
  #allocation1 [shape = 'u32[72,128]{1,0:T(1,128)}', space=vmem, size = 0x9000, scoped, tag = 'internal scratch']
  %s0 = inlined_call_operand.vmem [shape: f32[3,108], index: 0, kind: input, shape index: {}]
  %s1 = inlined_call_operand.vmem [shape: f32[3,1], index: 1, kind: input, shape index: {}]
  %s2 = inlined_call_operand.vmem [shape: f32[4,128], index: 2, kind: input, shape index: {}]
  %s3 = inlined_call_operand.vmem [shape: bf16[12,128], index: 3, kind: input, shape index: {}]
  %s4 = inlined_call_operand.vmem [shape: f32[4,3,128], index: 4, kind: output, shape index: {}]
  %s5 = sld [smem:[#allocation0]]
  $region26: #{_lambda_.9} parent=0
    _
  %s7 = ssub.s32 1, %s5
  %s8 = scalar_select 0, %s7, %s5
  // Predicated region
  $region2: #{_lambda_.9} parent=0 // pred_check
    _
  $region3: #{_lambda_.9} parent=0 // pred_check_branch
    %10 = sbr.rel (0) target = $region5
  $region4: #{_lambda_.9} parent=0 // pred_region
    _
  $region5: #{_lambda_.9} parent=0 // pred_fallthru
    _
  // Predicated region
  $region6: #{_lambda_.9} parent=0 // pred_check
    _
  $region7: #{_lambda_.9} parent=0 // pred_check_branch
    %12 = sbr.rel (0) target = $region9
  $region8: #{_lambda_.9} parent=0 // pred_region
    _
  $region9: #{_lambda_.9} parent=0 // pred_fallthru
    _
  // Predicated region
  $region10: #{_lambda_.9} parent=0 // pred_check
    _
  $region11: #{_lambda_.9} parent=0 // pred_check_branch
    %14 = sbr.rel (0) target = $region13
  $region12: #{_lambda_.9} parent=0 // pred_region
    _
  $region13: #{_lambda_.9} parent=0 // pred_fallthru
    _
  // Predicated region
  $region14: #{_lambda_.9} parent=0 // pred_check
    _
  $region15: #{_lambda_.9} parent=0 // pred_check_branch
    %16 = sbr.rel (0) target = $region17
  $region16: #{_lambda_.9} parent=0 // pred_region
    _
  $region17: #{_lambda_.9} parent=0 // pred_fallthru
    _
  %v17 = vld [vmem:[%s3] sm:$0xf]
  %v18 = vld [vmem:[%s3 + $0x4] sm:$0x3]
  %v19 = vunpack.c.l.bf16 %v17
  %v20 = vunpack.c.l.bf16 %v18
  %v21 = vld [vmem:[%s2] sm:$0xf]
  %22 = vrot.lane.b32.xlu0 %v19, 9
  %v23 = vpop.permute.xlu0 %22
  %24 = vrot.lane.b32.xlu0 %v20, 9
  %v25 = vpop.permute.xlu0 %24
  %v26 = vperm.slane %v21, 0
  %v27 = vmul.f32 %v23, %v26
  %v28 = vmul.f32 %v25, %v26
  %v29 = vperm.slane %v21, 2
  %v30 = vmul.f32 %v27, %v29
  %v31 = vmul.f32 %v28, %v29
  %32 = vrot.lane.b32.xlu0 %v19, 8
  %v33 = vpop.permute.xlu0 %32
  %34 = vrot.lane.b32.xlu0 %v20, 8
  %v35 = vpop.permute.xlu0 %34
  %v36 = vmul.f32 %v33, %v26
  %v37 = vmul.f32 %v35, %v26
  %38 = vrot.lane.b32.xlu0 %v19, 1
  %v39 = vpop.permute.xlu0 %38
  %40 = vrot.lane.b32.xlu0 %v20, 1
  %v41 = vpop.permute.xlu0 %40
  %v42 = vmul.f32 %v39, %v29
  %v43 = vmul.f32 %v41, %v29
  %vm46 = vcmask 1043456
  %v47 = vrot.slane %v36, 4
  %v48 = vrot.slane %v37, 4
  %v49 = vsel %vm46, %v47, %v48
  %v54 = vrot.slane %v42, 4
  %v55 = vrot.slane %v43, 4
  %v56 = vsel %vm46, %v54, %v55
  %v61 = vrot.slane %v19, 4
  %v62 = vrot.slane %v20, 4
  %v63 = vsel %vm46, %v61, %v62
  %v66 = vsel %vm46, %v31, %v47
  %v67 = vsel %vm46, %v37, %v54
  %v68 = vsel %vm46, %v20, %v61
  %v69 = vsel %vm46, %v43, %v61
  %v70 = vld [vmem:[%s0] sm:$0x7]
  %v71 = vld [vmem:[%s1] sm:$0x7]
  %73 = vset.pattern.permute.xlu0 0
  %74 = vperm.xlu0 %73, %v71
  %v75 = vpop.permute.xlu0 %74
  %vm77 = vcmask 883712
  %v79 = vsel %vm77, %v70, 0
  %v81 = vsel %vm46, %v20, 0
  %83 = vmatpush.msra.mxu0 0.0
  %84 = vmatpush.msra.mxu0 0.0
  %85 = vmatpush.msra.mxu0 %v81
  %86 = vmatpush.msra.mxu0 %v19
  %87 = vmatpush.msra.mxu0 %v63
  %88 = vmatpush.msra.mxu0 %v69
  %89 = vmatpush.msra.mxu0 %v42
  %90 = vmatpush.msra.mxu0 %v63
  %91 = vmatpush.msra.mxu0 %v68
  %92 = vmatpush.msra.mxu0 %v19
  %93 = vmatpush.msra.mxu0 %v56
  %94 = vmatpush.msra.mxu0 %v67
  %95 = vmatpush.msra.mxu0 %v36
  %96 = vmatpush.msra.mxu0 %v49
  %97 = vmatpush.msra.mxu0 %v66
  %98 = vmatpush.msra.mxu0 %v30
  %99 = vmatmul.f32.gmra.mxu0 %v79
  %v100 = vpop.f32.mrf.mxu0
  %v101 = vadd.f32 %v75, %v100
  %102 = vdwg.mxu0
  %103 = vst [vmem:[%s4] sm:$0x7] %v101
  %104 = vrot.lane.b32.xlu0 %v19, 7
  %v105 = vpop.permute.xlu0 %104
  %106 = vrot.lane.b32.xlu0 %v20, 7
  %v107 = vpop.permute.xlu0 %106
  %v108 = vmul.f32 %v105, %v26
  %v109 = vmul.f32 %v107, %v26
  %v110 = vperm.slane %v21, 3
  %v111 = vmul.f32 %v108, %v110
  %v112 = vmul.f32 %v109, %v110
  %113 = vrot.lane.b32.xlu0 %v19, 127
  %v114 = vpop.permute.xlu0 %113
  %115 = vrot.lane.b32.xlu0 %v20, 127
  %v116 = vpop.permute.xlu0 %115
  %v117 = vmul.f32 %v114, %v110
  %v118 = vmul.f32 %v116, %v110
  %v121 = vrot.slane %v117, 4
  %v122 = vrot.slane %v118, 4
  %v123 = vsel %vm46, %v121, %v122
  %v126 = vsel %vm46, %v37, %v47
  %v127 = vsel %vm46, %v112, %v61
  %v128 = vsel %vm46, %v20, %v121
  %v129 = vld [vmem:[%s0] sm:$0x7]
  %v130 = vld [vmem:[%s1] sm:$0x7]
  %132 = vset.pattern.permute.xlu0 0
  %133 = vperm.xlu0 %132, %v130
  %v134 = vpop.permute.xlu0 %133
  %v137 = vsel %vm77, %v129, 0
  %v139 = vsel %vm46, %v118, 0
  %141 = vmatpush.msra.mxu0 0.0
  %142 = vmatpush.msra.mxu0 0.0
  %143 = vmatpush.msra.mxu0 %v139
  %144 = vmatpush.msra.mxu0 %v117
  %145 = vmatpush.msra.mxu0 %v63
  %146 = vmatpush.msra.mxu0 %v68
  %147 = vmatpush.msra.mxu0 %v19
  %148 = vmatpush.msra.mxu0 %v123
  %149 = vmatpush.msra.mxu0 %v128
  %150 = vmatpush.msra.mxu0 %v19
  %151 = vmatpush.msra.mxu0 %v63
  %152 = vmatpush.msra.mxu0 %v127
  %153 = vmatpush.msra.mxu0 %v111
  %154 = vmatpush.msra.mxu0 %v49
  %155 = vmatpush.msra.mxu0 %v126
  %156 = vmatpush.msra.mxu0 %v36
  %157 = vmatmul.f32.gmra.mxu0 %v137
  %v158 = vpop.f32.mrf.mxu0
  %v159 = vadd.f32 %v134, %v158
  %160 = vdwg.mxu0
  %s161 = scalar_lea.vmem %s4, 4
  %162 = vst [vmem:[%s161] sm:$0x7] %v159
  %163 = vrot.lane.b32.xlu0 %v19, 121
  %v164 = vpop.permute.xlu0 %163
  %165 = vrot.lane.b32.xlu0 %v20, 121
  %v166 = vpop.permute.xlu0 %165
  %v167 = vperm.slane %v21, 1
  %v168 = vmul.f32 %v164, %v167
  %v169 = vmul.f32 %v166, %v167
  %v170 = vmul.f32 %v168, %v29
  %v171 = vmul.f32 %v169, %v29
  %172 = vrot.lane.b32.xlu0 %v19, 120
  %v173 = vpop.permute.xlu0 %172
  %174 = vrot.lane.b32.xlu0 %v20, 120
  %v175 = vpop.permute.xlu0 %174
  %v176 = vmul.f32 %v173, %v167
  %v177 = vmul.f32 %v175, %v167
  %v180 = vrot.slane %v176, 4
  %v181 = vrot.slane %v177, 4
  %v182 = vsel %vm46, %v180, %v181
  %v185 = vsel %vm46, %v20, %v54
  %v186 = vsel %vm46, %v171, %v180
  %v187 = vld [vmem:[%s0] sm:$0x7]
  %v188 = vld [vmem:[%s1] sm:$0x7]
  %190 = vset.pattern.permute.xlu0 0
  %191 = vperm.xlu0 %190, %v188
  %v192 = vpop.permute.xlu0 %191
  %v195 = vsel %vm77, %v187, 0
  %v197 = vsel %vm46, %v177, 0
  %199 = vmatpush.msra.mxu0 0.0
  %200 = vmatpush.msra.mxu0 0.0
  %201 = vmatpush.msra.mxu0 %v197
  %202 = vmatpush.msra.mxu0 %v176
  %203 = vmatpush.msra.mxu0 %v182
  %204 = vmatpush.msra.mxu0 %v186
  %205 = vmatpush.msra.mxu0 %v170
  %206 = vmatpush.msra.mxu0 %v63
  %207 = vmatpush.msra.mxu0 %v68
  %208 = vmatpush.msra.mxu0 %v19
  %209 = vmatpush.msra.mxu0 %v56
  %210 = vmatpush.msra.mxu0 %v185
  %211 = vmatpush.msra.mxu0 %v19
  %212 = vmatpush.msra.mxu0 %v63
  %213 = vmatpush.msra.mxu0 %v69
  %214 = vmatpush.msra.mxu0 %v42
  %215 = vmatmul.f32.gmra.mxu0 %v195
  %v216 = vpop.f32.mrf.mxu0
  %v217 = vadd.f32 %v192, %v216
  %218 = vdwg.mxu0
  %s219 = scalar_lea.vmem %s4, 8
  %220 = vst [vmem:[%s219] sm:$0x7] %v217
  %221 = vrot.lane.b32.xlu0 %v19, 119
  %v222 = vpop.permute.xlu0 %221
  %223 = vrot.lane.b32.xlu0 %v20, 119
  %v224 = vpop.permute.xlu0 %223
  %v225 = vmul.f32 %v222, %v167
  %v226 = vmul.f32 %v224, %v167
  %v227 = vmul.f32 %v225, %v110
  %v228 = vmul.f32 %v226, %v110
  %v229 = vsel %vm46, %v118, %v61
  %v230 = vsel %vm46, %v177, %v180
  %v231 = vld [vmem:[%s0] sm:$0x7]
  %v232 = vld [vmem:[%s1] sm:$0x7]
  %234 = vset.pattern.permute.xlu0 0
  %235 = vperm.xlu0 %234, %v232
  %v236 = vpop.permute.xlu0 %235
  %v239 = vsel %vm77, %v231, 0
  %v242 = vsel %vm46, %v228, 0
  %244 = vmatpush.msra.mxu0 0.0
  %245 = vmatpush.msra.mxu0 0.0
  %246 = vmatpush.msra.mxu0 %v242
  %247 = vmatpush.msra.mxu0 %v227
  %248 = vmatpush.msra.mxu0 %v182
  %249 = vmatpush.msra.mxu0 %v230
  %250 = vmatpush.msra.mxu0 %v176
  %251 = vmatpush.msra.mxu0 %v123
  %252 = vmatpush.msra.mxu0 %v128
  %253 = vmatpush.msra.mxu0 %v19
  %254 = vmatpush.msra.mxu0 %v63
  %255 = vmatpush.msra.mxu0 %v229
  %256 = vmatpush.msra.mxu0 %v117
  %257 = vmatpush.msra.mxu0 %v63
  %258 = vmatpush.msra.mxu0 %v68
  %259 = vmatpush.msra.mxu0 %v19
  %260 = vmatmul.f32.gmra.mxu0 %v239
  %v261 = vpop.f32.mrf.mxu0
  %v262 = vadd.f32 %v236, %v261
  %263 = vdwg.mxu0
  %s264 = scalar_lea.vmem %s4, 12
  %265 = vst [vmem:[%s264] sm:$0x7] %v262
  // Predicated region
  $region18: #{_lambda_.9} parent=0 // pred_check
    _
  $region19: #{_lambda_.9} parent=0 // pred_check_branch
    %267 = sbr.rel (0) target = $region21
  $region20: #{_lambda_.9} parent=0 // pred_region
    _
  $region21: #{_lambda_.9} parent=0 // pred_fallthru
    _
  // Predicated region
  $region22: #{_lambda_.9} parent=0 // pred_check
    _
  $region23: #{_lambda_.9} parent=0 // pred_check_branch
    %269 = sbr.rel (0) target = $region25
  $region24: #{_lambda_.9} parent=0 // pred_region
    _
  $region25: #{_lambda_.9} parent=0 // pred_fallthru
    _

</llo_original>
